<compile_context>
chip_gen: v7x
topology: tpu7x:2x2x1
jax: 0.10.0
libtpu: 0.0.40
codegen_flags: <defaults>
</compile_context>

<pallas_src>
import math
import functools

import numpy as np
import jax
import jax.numpy as jnp
from jax import lax
from jax.experimental import pallas as pl
from jax.experimental.pallas import tpu as pltpu


def _sine_pe3d_kernel(mask_ref, inv_ref, out_ref, emb_ref, *,
                      N, H, W, num_feats, normalize, scale, eps, offset):
    """One (batch, component) grid step.

    mask_ref: (1, N, HW) int32        -- flattened mask block (non-zero == ignored)
    inv_ref:  (half, 1) float32       -- 1 / dim_t[2j] per sin/cos pair
    out_ref:  (1, N, num_feats, HW)   -- this component's channel block
    emb_ref:  (N, HW) float32 VMEM scratch -- (normalized) cumulative-sum embed
    """
    HW = H * W
    half = num_feats // 2
    comp = pl.program_id(1)            # 0 -> n (over N), 1 -> y (over H), 2 -> x (over W)

    nm = (1 - mask_ref[0]).astype(jnp.float32)            # (N, HW)

    # Static shifts along sublane / lane axes with zero fill (no wraparound).
    def shift_down(x, k):   # out[i, :] = x[i - k, :]   (sublane axis)
        return jnp.concatenate([jnp.zeros_like(x[:k, :]), x[:-k, :]], axis=0)

    def shift_right(x, k):  # out[:, p] = x[:, p - k]   (lane axis)
        return jnp.concatenate([jnp.zeros_like(x[:, :k]), x[:, :-k]], axis=1)

    def shift_left(x, k):   # out[:, p] = x[:, p + k]   (lane axis)
        return jnp.concatenate([x[:, k:], jnp.zeros_like(x[:, :k])], axis=1)

    @pl.when(comp == 0)
    def _():
        # cumsum over N (sublane axis): Hillis-Steele, ceil(log2(N)) steps.
        cum = nm
        k = 1
        while k < N:
            cum = cum + shift_down(cum, k)
            k *= 2
        if normalize:
            denom = jnp.sum(nm, axis=0, keepdims=True)    # total over N, (1, HW)
            cum = (cum + offset) * (scale / (denom + eps))
        emb_ref[...] = cum

    @pl.when(comp == 1)
    def _():
        # cumsum over H == stride-W prefix sum along the flattened lane axis.
        # Shifts by multiples of W preserve the w coordinate, so zero fill at the
        # array boundary is the only boundary handling needed (no masks).
        cum = nm
        k = 1
        while k < H:
            cum = cum + shift_right(cum, k * W)
            k *= 2
        if normalize:
            rev = nm                                      # suffix sums over H
            k = 1
            while k < H:
                rev = rev + shift_left(rev, k * W)
                k *= 2
            denom = cum + rev - nm                        # total over H per (n, w)
            cum = (cum + offset) * (scale / (denom + eps))
        emb_ref[...] = cum

    @pl.when(comp == 2)
    def _():
        # cumsum over W == segmented prefix sum within each W-wide lane block.
        # Lane coordinates are built with float math only (exact for these sizes)
        # to avoid relying on integer div/mod lowering.
        lane = lax.broadcasted_iota(jnp.int32, (N, HW), 1).astype(jnp.float32)
        h_of = jnp.floor((lane + 0.5) / float(W))
        wpos = lane - h_of * float(W)                     # exact integer values in f32
        cum = nm
        k = 1
        while k < W:
            cum = cum + jnp.where(wpos >= float(k), shift_right(cum, k), 0.0)
            k *= 2
        if normalize:
            rev = nm                                      # suffix sums over W
            k = 1
            while k < W:
                rev = rev + jnp.where(wpos < float(W - k), shift_left(rev, k), 0.0)
                k *= 2
            denom = cum + rev - nm                        # total over W per (n, h)
            cum = (cum + offset) * (scale / (denom + eps))
        emb_ref[...] = cum

    # Channel expansion: per row n, ONE sin and ONE cos over a (half, HW) block.
    # Channel layout within a component is [sin-block | cos-block], which matches
    # torch.stack((p[...,0::2].sin(), p[...,1::2].cos()), 4).view(B,N,H,W,-1)
    # because dim_t[2j] == dim_t[2j+1].
    emb = emb_ref[...]                                    # (N, HW)
    inv = inv_ref[...]                                    # (half, 1)
    for n in range(N):
        arg = emb[n:n + 1, :] * inv                       # (half, HW), lane-dense
        out_ref[0, n, :half, :] = jnp.sin(arg)
        out_ref[0, n, half:, :] = jnp.cos(arg)


def sine_positional_encoding_3d(mask, *, num_feats, temperature=10000,
                                normalize=False, scale=2 * math.pi,
                                eps=1e-6, offset=0.0):
    """Pallas-TPU forward of SinePositionalEncoding3D.

    mask: [B, N, H, W] integer array (non-zero == ignored position).
    returns: [B, N, 3*num_feats, H, W] float32.
    """
    assert num_feats % 2 == 0, "num_feats must be even"
    B, N, H, W = mask.shape
    HW = H * W
    C = 3 * num_feats
    half = num_feats // 2

    # dim_t exactly as the module (float32).  Even/odd entries are identical, so
    # one reciprocal per sin/cos pair is exact and replaces per-channel divides.
    i = np.arange(num_feats, dtype=np.float32)
    dim_t = np.float32(temperature) ** (
        2.0 * np.floor(i / 2.0).astype(np.float32) / np.float32(num_feats))
    inv_dim_t = (np.float32(1.0) / dim_t[0::2]).astype(np.float32).reshape(half, 1)

    mask2d = mask.astype(jnp.int32).reshape(B, N, HW)     # lane-dense input (free)

    kernel = functools.partial(
        _sine_pe3d_kernel, N=N, H=H, W=W, num_feats=num_feats,
        normalize=bool(normalize), scale=float(scale),
        eps=float(eps), offset=float(offset))

    cost = pl.CostEstimate(
        flops=6 * B * N * C * HW,
        transcendentals=B * N * C * HW,
        bytes_accessed=4 * B * N * C * HW + 4 * B * N * HW)

    out2d = pl.pallas_call(
        kernel,
        out_shape=jax.ShapeDtypeStruct((B, N, C, HW), jnp.float32),
        grid=(B, 3),
        in_specs=[
            pl.BlockSpec((1, N, HW), lambda b, c: (b, 0, 0)),
            pl.BlockSpec((half, 1), lambda b, c: (0, 0)),
        ],
        out_specs=pl.BlockSpec((1, N, num_feats, HW), lambda b, c: (b, 0, c, 0)),
        scratch_shapes=[pltpu.VMEM((N, HW), jnp.float32)],
        compiler_params=pltpu.CompilerParams(
            dimension_semantics=("parallel", "parallel"),
            vmem_limit_bytes=32 * 1024 * 1024),
        cost_estimate=cost,
    )(mask2d, jnp.asarray(inv_dim_t))

    # Free layout plumbing back to the module's NCHW-style return shape.
    return out2d.reshape(B, N, C, H, W)


def reference_jax(mask, num_feats, temperature, normalize, scale, eps, offset):
    """Pure-JAX transcription of the PyTorch forward (for verification)."""
    mask = mask.astype(jnp.int32)
    not_mask = 1 - mask
    n_embed = jnp.cumsum(not_mask, axis=1).astype(jnp.float32)
    y_embed = jnp.cumsum(not_mask, axis=2).astype(jnp.float32)
    x_embed = jnp.cumsum(not_mask, axis=3).astype(jnp.float32)
    if normalize:
        n_embed = (n_embed + offset) / (n_embed[:, -1:, :, :] + eps) * scale
        y_embed = (y_embed + offset) / (y_embed[:, :, -1:, :] + eps) * scale
        x_embed = (x_embed + offset) / (x_embed[:, :, :, -1:] + eps) * scale
    i = jnp.arange(num_feats, dtype=jnp.float32)
    dim_t = temperature ** (2.0 * jnp.floor(i / 2.0) / num_feats)

    def enc(embed):
        p = embed[..., None] / dim_t
        # torch.stack((sin of 0::2, cos of 1::2), dim=4).view(B,N,H,W,-1)
        # == concat([sin block, cos block], last axis)
        return jnp.concatenate(
            [jnp.sin(p[..., 0::2]), jnp.cos(p[..., 1::2])], axis=-1)

    pos = jnp.concatenate([enc(n_embed), enc(y_embed), enc(x_embed)], axis=-1)
    return jnp.transpose(pos, (0, 1, 4, 2, 3))


if __name__ == "__main__":
    key = jax.random.PRNGKey(0)
    B, N, H, W = 2, 4, 16, 16
    num_feats = 8

    # deterministic 0/1 mask (non-zero == ignored position)
    mask = (jax.random.uniform(key, (B, N, H, W)) < 0.3).astype(jnp.int32)

    for normalize in (False, True):
        out = sine_positional_encoding_3d(
            mask,
            num_feats=num_feats,
            temperature=10000,
            normalize=normalize,
            scale=2 * math.pi,
            eps=1e-6,
            offset=0.0,
        )
        out = jax.block_until_ready(out)
        assert out.shape == (B, N, 3 * num_feats, H, W)
        ref = reference_jax(mask, num_feats, 10000, normalize,
                            2 * math.pi, 1e-6, 0.0)
        np.testing.assert_allclose(
            np.asarray(out), np.asarray(ref), atol=2e-5, rtol=2e-5)

    print("KERNEL_OK")
</pallas_src>

<mosaic_0001>
module attributes {stable_mosaic.version = 11 : i64} {
  func.func @_sine_pe3d_kernel(%arg0: i32, %arg1: i32, %arg2: memref<1x4x256xi32, #tpu.memory_space<vmem>>, %arg3: memref<4x1xf32, #tpu.memory_space<vmem>>, %arg4: memref<1x4x8x256xf32, #tpu.memory_space<vmem>>, %arg5: memref<4x256xf32, #tpu.memory_space<vmem>>) attributes {dimension_semantics = [#tpu.dimension_semantics<parallel>, #tpu.dimension_semantics<parallel>], iteration_bounds = array<i64: 2, 3>, scalar_prefetch = 0 : i64, scratch_operands = 1 : i64, tpu.core_type = #tpu.core_type<tc>, window_params = [{transform_indices = @transform_0, window_bounds = array<i64: 1, 4, 256>}, {pipeline_mode = #tpu.pipeline_mode<synchronous>, transform_indices = @transform_1, window_bounds = array<i64: 4, 1>}, {transform_indices = @transform_2, window_bounds = array<i64: 1, 4, 8, 256>}]} {
    %c0 = arith.constant 0 : index
    %c0_0 = arith.constant 0 : index
    %c0_1 = arith.constant 0 : index
    %0 = vector.load %arg2[%c0, %c0_0, %c0_1] : memref<1x4x256xi32, #tpu.memory_space<vmem>>, vector<1x4x256xi32>
    %1 = vector.shape_cast %0 : vector<1x4x256xi32> to vector<4x256xi32>
    %c1_i32 = arith.constant 1 : i32
    %2 = vector.broadcast %c1_i32 : i32 to vector<4x256xi32>
    %3 = arith.subi %2, %1 : vector<4x256xi32>
    %4 = arith.sitofp %3 : vector<4x256xi32> to vector<4x256xf32>
    %c0_i32 = arith.constant 0 : i32
    %5 = arith.cmpi eq, %arg1, %c0_i32 : i32
    %6 = arith.extui %5 : i1 to i32
    %c0_i32_2 = arith.constant 0 : i32
    %7 = arith.cmpi ne, %6, %c0_i32_2 : i32
    scf.if %7 {
      %cst = arith.constant 0.000000e+00 : f32
      %64 = vector.broadcast %cst : f32 to vector<1x256xf32>
      %65 = vector.extract_strided_slice %4 {offsets = [0, 0], sizes = [3, 256], strides = [1, 1]} : vector<4x256xf32> to vector<3x256xf32>
      %66 = tpu.concatenate %64, %65 in 0 : vector<1x256xf32>, vector<3x256xf32> -> vector<4x256xf32>
      %67 = arith.addf %4, %66 : vector<4x256xf32>
      %cst_38 = arith.constant 0.000000e+00 : f32
      %68 = vector.broadcast %cst_38 : f32 to vector<2x256xf32>
      %69 = vector.extract_strided_slice %67 {offsets = [0, 0], sizes = [2, 256], strides = [1, 1]} : vector<4x256xf32> to vector<2x256xf32>
      %70 = tpu.concatenate %68, %69 in 0 : vector<2x256xf32>, vector<2x256xf32> -> vector<4x256xf32>
      %71 = arith.addf %67, %70 : vector<4x256xf32>
      %c0_39 = arith.constant 0 : index
      %c0_40 = arith.constant 0 : index
      %72 = vector.load %arg5[%c0_39, %c0_40] : memref<4x256xf32, #tpu.memory_space<vmem>>, vector<4x256xf32>
      tpu.vector_store %arg5[%c0_39, %c0_40], %71 {strides = array<i32>} : memref<4x256xf32, #tpu.memory_space<vmem>>, vector<4x256xf32>,
    } else {
    }
    %c1_i32_3 = arith.constant 1 : i32
    %8 = arith.cmpi eq, %arg1, %c1_i32_3 : i32
    %9 = arith.extui %8 : i1 to i32
    %c0_i32_4 = arith.constant 0 : i32
    %10 = arith.cmpi ne, %9, %c0_i32_4 : i32
    scf.if %10 {
      %cst = arith.constant 0.000000e+00 : f32
      %64 = vector.broadcast %cst : f32 to vector<4x16xf32>
      %65 = vector.extract_strided_slice %4 {offsets = [0, 0], sizes = [4, 240], strides = [1, 1]} : vector<4x256xf32> to vector<4x240xf32>
      %66 = tpu.concatenate %64, %65 in 1 : vector<4x16xf32>, vector<4x240xf32> -> vector<4x256xf32>
      %67 = arith.addf %4, %66 : vector<4x256xf32>
      %cst_38 = arith.constant 0.000000e+00 : f32
      %68 = vector.broadcast %cst_38 : f32 to vector<4x32xf32>
      %69 = vector.extract_strided_slice %67 {offsets = [0, 0], sizes = [4, 224], strides = [1, 1]} : vector<4x256xf32> to vector<4x224xf32>
      %70 = tpu.concatenate %68, %69 in 1 : vector<4x32xf32>, vector<4x224xf32> -> vector<4x256xf32>
      %71 = arith.addf %67, %70 : vector<4x256xf32>
      %cst_39 = arith.constant 0.000000e+00 : f32
      %72 = vector.broadcast %cst_39 : f32 to vector<4x64xf32>
      %73 = vector.extract_strided_slice %71 {offsets = [0, 0], sizes = [4, 192], strides = [1, 1]} : vector<4x256xf32> to vector<4x192xf32>
      %74 = tpu.concatenate %72, %73 in 1 : vector<4x64xf32>, vector<4x192xf32> -> vector<4x256xf32>
      %75 = arith.addf %71, %74 : vector<4x256xf32>
      %cst_40 = arith.constant 0.000000e+00 : f32
      %76 = vector.broadcast %cst_40 : f32 to vector<4x128xf32>
      %77 = vector.extract_strided_slice %75 {offsets = [0, 0], sizes = [4, 128], strides = [1, 1]} : vector<4x256xf32> to vector<4x128xf32>
      %78 = tpu.concatenate %76, %77 in 1 : vector<4x128xf32>, vector<4x128xf32> -> vector<4x256xf32>
      %79 = arith.addf %75, %78 : vector<4x256xf32>
      %c0_41 = arith.constant 0 : index
      %c0_42 = arith.constant 0 : index
      %80 = vector.load %arg5[%c0_41, %c0_42] : memref<4x256xf32, #tpu.memory_space<vmem>>, vector<4x256xf32>
      tpu.vector_store %arg5[%c0_41, %c0_42], %79 {strides = array<i32>} : memref<4x256xf32, #tpu.memory_space<vmem>>, vector<4x256xf32>,
    } else {
    }
    %c2_i32 = arith.constant 2 : i32
    %11 = arith.cmpi eq, %arg1, %c2_i32 : i32
    %12 = arith.extui %11 : i1 to i32
    %c0_i32_5 = arith.constant 0 : i32
    %13 = arith.cmpi ne, %12, %c0_i32_5 : i32
    scf.if %13 {
      %64 = tpu.iota {dimensions = array<i32: 1>} : vector<4x256xi32>
      %65 = arith.sitofp %64 : vector<4x256xi32> to vector<4x256xf32>
      %cst = arith.constant 5.000000e-01 : f32
      %66 = vector.broadcast %cst : f32 to vector<4x256xf32>
      %67 = arith.addf %65, %66 : vector<4x256xf32>
      %cst_38 = arith.constant 1.600000e+01 : f32
      %68 = vector.broadcast %cst_38 : f32 to vector<4x256xf32>
      %69 = arith.divf %67, %68 : vector<4x256xf32>
      %70 = math.floor %69 : vector<4x256xf32>
      %cst_39 = arith.constant 1.600000e+01 : f32
      %71 = vector.broadcast %cst_39 : f32 to vector<4x256xf32>
      %72 = arith.mulf %70, %71 : vector<4x256xf32>
      %73 = arith.subf %65, %72 : vector<4x256xf32>
      %cst_40 = arith.constant 1.000000e+00 : f32
      %74 = vector.broadcast %cst_40 : f32 to vector<4x256xf32>
      %75 = arith.cmpf oge, %73, %74 : vector<4x256xf32>
      %cst_41 = arith.constant 0.000000e+00 : f32
      %76 = vector.broadcast %cst_41 : f32 to vector<4x1xf32>
      %77 = vector.extract_strided_slice %4 {offsets = [0, 0], sizes = [4, 255], strides = [1, 1]} : vector<4x256xf32> to vector<4x255xf32>
      %78 = tpu.concatenate %76, %77 in 1 : vector<4x1xf32>, vector<4x255xf32> -> vector<4x256xf32>
      %cst_42 = arith.constant 0.000000e+00 : f32
      %79 = vector.broadcast %cst_42 : f32 to vector<4x256xf32>
      %80 = arith.select %75, %78, %79 : vector<4x256xi1>, vector<4x256xf32>
      %81 = arith.addf %4, %80 : vector<4x256xf32>
      %cst_43 = arith.constant 2.000000e+00 : f32
      %82 = vector.broadcast %cst_43 : f32 to vector<4x256xf32>
      %83 = arith.cmpf oge, %73, %82 : vector<4x256xf32>
      %cst_44 = arith.constant 0.000000e+00 : f32
      %84 = vector.broadcast %cst_44 : f32 to vector<4x2xf32>
      %85 = vector.extract_strided_slice %81 {offsets = [0, 0], sizes = [4, 254], strides = [1, 1]} : vector<4x256xf32> to vector<4x254xf32>
      %86 = tpu.concatenate %84, %85 in 1 : vector<4x2xf32>, vector<4x254xf32> -> vector<4x256xf32>
      %cst_45 = arith.constant 0.000000e+00 : f32
      %87 = vector.broadcast %cst_45 : f32 to vector<4x256xf32>
      %88 = arith.select %83, %86, %87 : vector<4x256xi1>, vector<4x256xf32>
      %89 = arith.addf %81, %88 : vector<4x256xf32>
      %cst_46 = arith.constant 4.000000e+00 : f32
      %90 = vector.broadcast %cst_46 : f32 to vector<4x256xf32>
      %91 = arith.cmpf oge, %73, %90 : vector<4x256xf32>
      %cst_47 = arith.constant 0.000000e+00 : f32
      %92 = vector.broadcast %cst_47 : f32 to vector<4x4xf32>
      %93 = vector.extract_strided_slice %89 {offsets = [0, 0], sizes = [4, 252], strides = [1, 1]} : vector<4x256xf32> to vector<4x252xf32>
      %94 = tpu.concatenate %92, %93 in 1 : vector<4x4xf32>, vector<4x252xf32> -> vector<4x256xf32>
      %cst_48 = arith.constant 0.000000e+00 : f32
      %95 = vector.broadcast %cst_48 : f32 to vector<4x256xf32>
      %96 = arith.select %91, %94, %95 : vector<4x256xi1>, vector<4x256xf32>
      %97 = arith.addf %89, %96 : vector<4x256xf32>
      %cst_49 = arith.constant 8.000000e+00 : f32
      %98 = vector.broadcast %cst_49 : f32 to vector<4x256xf32>
      %99 = arith.cmpf oge, %73, %98 : vector<4x256xf32>
      %cst_50 = arith.constant 0.000000e+00 : f32
      %100 = vector.broadcast %cst_50 : f32 to vector<4x8xf32>
      %101 = vector.extract_strided_slice %97 {offsets = [0, 0], sizes = [4, 248], strides = [1, 1]} : vector<4x256xf32> to vector<4x248xf32>
      %102 = tpu.concatenate %100, %101 in 1 : vector<4x8xf32>, vector<4x248xf32> -> vector<4x256xf32>
      %cst_51 = arith.constant 0.000000e+00 : f32
      %103 = vector.broadcast %cst_51 : f32 to vector<4x256xf32>
      %104 = arith.select %99, %102, %103 : vector<4x256xi1>, vector<4x256xf32>
      %105 = arith.addf %97, %104 : vector<4x256xf32>
      %c0_52 = arith.constant 0 : index
      %c0_53 = arith.constant 0 : index
      %106 = vector.load %arg5[%c0_52, %c0_53] : memref<4x256xf32, #tpu.memory_space<vmem>>, vector<4x256xf32>
      tpu.vector_store %arg5[%c0_52, %c0_53], %105 {strides = array<i32>} : memref<4x256xf32, #tpu.memory_space<vmem>>, vector<4x256xf32>,
    } else {
    }
    %c0_6 = arith.constant 0 : index
    %c0_7 = arith.constant 0 : index
    %14 = vector.load %arg5[%c0_6, %c0_7] : memref<4x256xf32, #tpu.memory_space<vmem>>, vector<4x256xf32>
    %c0_8 = arith.constant 0 : index
    %c0_9 = arith.constant 0 : index
    %15 = vector.load %arg3[%c0_8, %c0_9] : memref<4x1xf32, #tpu.memory_space<vmem>>, vector<4x1xf32>
    %16 = vector.extract_strided_slice %14 {offsets = [0, 0], sizes = [1, 256], strides = [1, 1]} : vector<4x256xf32> to vector<1x256xf32>
    %17 = vector.broadcast %16 : vector<1x256xf32> to vector<4x256xf32>
    %18 = vector.broadcast %15 : vector<4x1xf32> to vector<4x256xf32>
    %19 = arith.mulf %17, %18 : vector<4x256xf32>
    %20 = math.sin %19 : vector<4x256xf32>
    %c0_10 = arith.constant 0 : index
    %c0_11 = arith.constant 0 : index
    %c0_12 = arith.constant 0 : index
    %c0_13 = arith.constant 0 : index
    %21 = vector.load %arg4[%c0_10, %c0_11, %c0_12, %c0_13] : memref<1x4x8x256xf32, #tpu.memory_space<vmem>>, vector<1x1x4x256xf32>
    %22 = vector.shape_cast %21 : vector<1x1x4x256xf32> to vector<4x256xf32>
    %23 = vector.shape_cast %20 : vector<4x256xf32> to vector<1x1x4x256xf32>
    tpu.vector_store %arg4[%c0_10, %c0_11, %c0_12, %c0_13], %23 {strides = array<i32>} : memref<1x4x8x256xf32, #tpu.memory_space<vmem>>, vector<1x1x4x256xf32>,
    %24 = math.cos %19 : vector<4x256xf32>
    %c0_14 = arith.constant 0 : index
    %c0_15 = arith.constant 0 : index
    %c4 = arith.constant 4 : index
    %c0_16 = arith.constant 0 : index
    %25 = vector.load %arg4[%c0_14, %c0_15, %c4, %c0_16] : memref<1x4x8x256xf32, #tpu.memory_space<vmem>>, vector<1x1x4x256xf32>
    %26 = vector.shape_cast %25 : vector<1x1x4x256xf32> to vector<4x256xf32>
    %27 = vector.shape_cast %24 : vector<4x256xf32> to vector<1x1x4x256xf32>
    tpu.vector_store %arg4[%c0_14, %c0_15, %c4, %c0_16], %27 {strides = array<i32>} : memref<1x4x8x256xf32, #tpu.memory_space<vmem>>, vector<1x1x4x256xf32>,
    %28 = vector.extract_strided_slice %14 {offsets = [1, 0], sizes = [1, 256], strides = [1, 1]} : vector<4x256xf32> to vector<1x256xf32>
    %29 = vector.broadcast %28 : vector<1x256xf32> to vector<4x256xf32>
    %30 = vector.broadcast %15 : vector<4x1xf32> to vector<4x256xf32>
    %31 = arith.mulf %29, %30 : vector<4x256xf32>
    %32 = math.sin %31 : vector<4x256xf32>
    %c0_17 = arith.constant 0 : index
    %c1 = arith.constant 1 : index
    %c0_18 = arith.constant 0 : index
    %c0_19 = arith.constant 0 : index
    %33 = vector.load %arg4[%c0_17, %c1, %c0_18, %c0_19] : memref<1x4x8x256xf32, #tpu.memory_space<vmem>>, vector<1x1x4x256xf32>
    %34 = vector.shape_cast %33 : vector<1x1x4x256xf32> to vector<4x256xf32>
    %35 = vector.shape_cast %32 : vector<4x256xf32> to vector<1x1x4x256xf32>
    tpu.vector_store %arg4[%c0_17, %c1, %c0_18, %c0_19], %35 {strides = array<i32>} : memref<1x4x8x256xf32, #tpu.memory_space<vmem>>, vector<1x1x4x256xf32>,
    %36 = math.cos %31 : vector<4x256xf32>
    %c0_20 = arith.constant 0 : index
    %c1_21 = arith.constant 1 : index
    %c4_22 = arith.constant 4 : index
    %c0_23 = arith.constant 0 : index
    %37 = vector.load %arg4[%c0_20, %c1_21, %c4_22, %c0_23] : memref<1x4x8x256xf32, #tpu.memory_space<vmem>>, vector<1x1x4x256xf32>
    %38 = vector.shape_cast %37 : vector<1x1x4x256xf32> to vector<4x256xf32>
    %39 = vector.shape_cast %36 : vector<4x256xf32> to vector<1x1x4x256xf32>
    tpu.vector_store %arg4[%c0_20, %c1_21, %c4_22, %c0_23], %39 {strides = array<i32>} : memref<1x4x8x256xf32, #tpu.memory_space<vmem>>, vector<1x1x4x256xf32>,
    %40 = vector.extract_strided_slice %14 {offsets = [2, 0], sizes = [1, 256], strides = [1, 1]} : vector<4x256xf32> to vector<1x256xf32>
    %41 = vector.broadcast %40 : vector<1x256xf32> to vector<4x256xf32>
    %42 = vector.broadcast %15 : vector<4x1xf32> to vector<4x256xf32>
    %43 = arith.mulf %41, %42 : vector<4x256xf32>
    %44 = math.sin %43 : vector<4x256xf32>
    %c0_24 = arith.constant 0 : index
    %c2 = arith.constant 2 : index
    %c0_25 = arith.constant 0 : index
    %c0_26 = arith.constant 0 : index
    %45 = vector.load %arg4[%c0_24, %c2, %c0_25, %c0_26] : memref<1x4x8x256xf32, #tpu.memory_space<vmem>>, vector<1x1x4x256xf32>
    %46 = vector.shape_cast %45 : vector<1x1x4x256xf32> to vector<4x256xf32>
    %47 = vector.shape_cast %44 : vector<4x256xf32> to vector<1x1x4x256xf32>
    tpu.vector_store %arg4[%c0_24, %c2, %c0_25, %c0_26], %47 {strides = array<i32>} : memref<1x4x8x256xf32, #tpu.memory_space<vmem>>, vector<1x1x4x256xf32>,
    %48 = math.cos %43 : vector<4x256xf32>
    %c0_27 = arith.constant 0 : index
    %c2_28 = arith.constant 2 : index
    %c4_29 = arith.constant 4 : index
    %c0_30 = arith.constant 0 : index
    %49 = vector.load %arg4[%c0_27, %c2_28, %c4_29, %c0_30] : memref<1x4x8x256xf32, #tpu.memory_space<vmem>>, vector<1x1x4x256xf32>
    %50 = vector.shape_cast %49 : vector<1x1x4x256xf32> to vector<4x256xf32>
    %51 = vector.shape_cast %48 : vector<4x256xf32> to vector<1x1x4x256xf32>
    tpu.vector_store %arg4[%c0_27, %c2_28, %c4_29, %c0_30], %51 {strides = array<i32>} : memref<1x4x8x256xf32, #tpu.memory_space<vmem>>, vector<1x1x4x256xf32>,
    %52 = vector.extract_strided_slice %14 {offsets = [3, 0], sizes = [1, 256], strides = [1, 1]} : vector<4x256xf32> to vector<1x256xf32>
    %53 = vector.broadcast %52 : vector<1x256xf32> to vector<4x256xf32>
    %54 = vector.broadcast %15 : vector<4x1xf32> to vector<4x256xf32>
    %55 = arith.mulf %53, %54 : vector<4x256xf32>
    %56 = math.sin %55 : vector<4x256xf32>
    %c0_31 = arith.constant 0 : index
    %c3 = arith.constant 3 : index
    %c0_32 = arith.constant 0 : index
    %c0_33 = arith.constant 0 : index
    %57 = vector.load %arg4[%c0_31, %c3, %c0_32, %c0_33] : memref<1x4x8x256xf32, #tpu.memory_space<vmem>>, vector<1x1x4x256xf32>
    %58 = vector.shape_cast %57 : vector<1x1x4x256xf32> to vector<4x256xf32>
    %59 = vector.shape_cast %56 : vector<4x256xf32> to vector<1x1x4x256xf32>
    tpu.vector_store %arg4[%c0_31, %c3, %c0_32, %c0_33], %59 {strides = array<i32>} : memref<1x4x8x256xf32, #tpu.memory_space<vmem>>, vector<1x1x4x256xf32>,
    %60 = math.cos %55 : vector<4x256xf32>
    %c0_34 = arith.constant 0 : index
    %c3_35 = arith.constant 3 : index
    %c4_36 = arith.constant 4 : index
    %c0_37 = arith.constant 0 : index
    %61 = vector.load %arg4[%c0_34, %c3_35, %c4_36, %c0_37] : memref<1x4x8x256xf32, #tpu.memory_space<vmem>>, vector<1x1x4x256xf32>
    %62 = vector.shape_cast %61 : vector<1x1x4x256xf32> to vector<4x256xf32>
    %63 = vector.shape_cast %60 : vector<4x256xf32> to vector<1x1x4x256xf32>
    tpu.vector_store %arg4[%c0_34, %c3_35, %c4_36, %c0_37], %63 {strides = array<i32>} : memref<1x4x8x256xf32, #tpu.memory_space<vmem>>, vector<1x1x4x256xf32>,
    return
  }
  func.func @transform_0(%arg0: i32, %arg1: i32) -> (i32, i32, i32) {
    %c0_i32 = arith.constant 0 : i32
    %c0_i32_0 = arith.constant 0 : i32
    %c0_i32_1 = arith.constant 0 : i32
    return %arg0, %c0_i32, %c0_i32_0 : i32, i32, i32
  }
  func.func @transform_1(%arg0: i32, %arg1: i32) -> (i32, i32) {
    %c0_i32 = arith.constant 0 : i32
    %c0_i32_0 = arith.constant 0 : i32
    %c0_i32_1 = arith.constant 0 : i32
    return %c0_i32, %c0_i32_0 : i32, i32
  }
  func.func @transform_2(%arg0: i32, %arg1: i32) -> (i32, i32, i32, i32) {
    %c0_i32 = arith.constant 0 : i32
    %c0_i32_0 = arith.constant 0 : i32
    %c0_i32_1 = arith.constant 0 : i32
    return %arg0, %c0_i32, %arg1, %c0_i32_0 : i32, i32, i32, i32
  }
}

</mosaic_0001>

<llo_original>
// kernel: tpu_custom_call.1
$region0: #{tpu_custom_call.1}
  #allocation0 [shape = 'u32[]', space=smem, size = 0x4, offset = 0x4, fixed_abs, tag = 'smem constant byte address 0x4 - core index']
  #allocation1 [shape = 'u32[144,128]{1,0:T(1,128)}', space=vmem, size = 0x12000, scoped, tag = 'internal scratch']
  #allocation2 [shape = 'f32[4,256]{1,0:T(4,128)}', space=vmem, size = 0x1000, scoped, tag = 'scratch operand']
  %s0 = inlined_call_operand.hbm [shape: s32[2,4,256], index: 0, kind: input, shape index: {}]
  %s1 = inlined_call_operand.vmem [shape: f32[4,1], index: 1, kind: input, shape index: {}]
  %s2 = inlined_call_operand.hbm [shape: f32[2,4,24,256], index: 2, kind: output, shape index: {}]
  %s3 = sld [smem:[#allocation0]]
  $region57: #{tpu_custom_call.1} parent=0
    _
  %s5 = ssub.s32 1, %s3
  %s6 = scalar_select 0, %s5, %s3
  $region1: #{tpu_custom_call.1} parent=0
    #allocation3 [shape = 'u8[8192]{0}', space=vmem, size = 0x2000, scoped, tag = 'input window, operand 0']
    #allocation4 [shape = 's32[2]{0}', space=sflag, size = 0x8, scoped, tag = 'scoped memory for tpu_custom_call.1']
    #allocation5 [shape = 's32[2]{0}', space=sflag, size = 0x8, scoped, tag = 'scoped memory for tpu_custom_call.1']
    #allocation6 [shape = 'u8[65536]{0}', space=vmem, size = 0x10000, scoped, tag = 'output window, operand 0']
    %7 = vsyncpa [#allocation4], 0
    %s8 = scalar_lea.sflag [#allocation4], 1
    %9 = vsyncpa %s8, 0
    %10 = vsyncpa [#allocation5], 0
    %s11 = scalar_lea.sflag [#allocation5], 1
    %12 = vsyncpa %s11, 0
    loop: start=0, step=1, limit=8
    $region2: #{tpu_custom_call.1} parent=1 // loop_pre_header
      _
    $region3: #{tpu_custom_call.1} parent=1 // loop_header
      %s14 = sphi 0, %s18
      %p15 = scmp.ge.s32.totalorder %s14, 8
      %s21 = sphi 0, %s33
      %s22 = sphi 0, %s29
      %s23 = sphi 0, %s21
      %s24 = sphi 0, %s22
      %s25 = sphi 0, %s23
      %s26 = sphi 0, %s24
      %s36 = sphi 0, %s38
      %s39 = sphi 0, %s36
      %s40 = sphi 0, %s39
      %s56 = sphi 0, %s40
      %s60 = sphi 0, %s60
      %s62 = sphi 0, %s60
      %s63 = sphi 0, %s62
      %s77 = sphi 0, %s63
      %s85 = sphi 0, %s87
      %s88 = sphi 0, %s85
      %s89 = sphi 0, %s88
      %s105 = sphi 0, %s89
    $region4: #{tpu_custom_call.1} parent=1 // loop_header_branch
      %17 = sbr.rel (%p15) target = $region8
    $region5: #{tpu_custom_call.1} parent=1 // loop_body
      %s19 = ssub.s32 %s14, 1
      %s20 = ssub.s32 %s14, 2
      %s27 = sadd.s32 1, %s22
      %p28 = scmp.ge.s32.totalorder %s27, 3
      %s29 = scalar_select %p28, 0, %s27
      %s30 = sadd.s32 1, %s21
      %s31 = scalar_select %p28, %s30, %s21
      %p32 = scmp.ge.s32.totalorder %s31, 2
      %s33 = scalar_select %p32, 0, %s31
      %s34 = ssub.s32 %s21, %s33
      %p35 = scmp.eq.s32.totalorder %s34, 0
      %s37 = sadd.s32 %s36, 1
      %s38 = scalar_select %p35, %s36, %s37
      %p41 = pneg %p35
      %p42 = scmp.eq.s32.totalorder %s14, 5
      %p43 = por %p41, %p42
      %p44 = scmp.ne.s32.totalorder %s36, %s39
      %p45 = scmp.eq.s32.totalorder %s14, 0
      %p46 = por %p44, %p45
      %p47 = scmp.ne.s32.totalorder %s36, %s39
      %p48 = scmp.eq.s32.totalorder %s19, 5
      %p49 = por %p47, %p48
      %p50 = scmp.ne.s32.totalorder %s39, %s40
      %p51 = scmp.eq.s32.totalorder %s19, 0
      %p52 = por %p50, %p51
      %p53 = scmp.ne.s32.totalorder %s39, %s40
      %p54 = scmp.eq.s32.totalorder %s20, 5
      %p55 = por %p53, %p54
      %p57 = scmp.ne.s32.totalorder %s40, %s56
      %p58 = scmp.eq.s32.totalorder %s20, 0
      %p59 = por %p57, %p58
      %s61 = sadd.s32 %s60, 1
      %p64 = scmp.eq.s32.totalorder %s14, 5
      %p65 = scmp.ne.s32.totalorder %s60, %s62
      %p66 = scmp.eq.s32.totalorder %s14, 0
      %p67 = por %p65, %p66
      %p68 = scmp.ne.s32.totalorder %s60, %s62
      %p69 = scmp.eq.s32.totalorder %s19, 5
      %p70 = por %p68, %p69
      %p71 = scmp.ne.s32.totalorder %s62, %s63
      %p72 = scmp.eq.s32.totalorder %s19, 0
      %p73 = por %p71, %p72
      %p74 = scmp.ne.s32.totalorder %s62, %s63
      %p75 = scmp.eq.s32.totalorder %s20, 5
      %p76 = por %p74, %p75
      %p78 = scmp.ne.s32.totalorder %s63, %s77
      %p79 = scmp.eq.s32.totalorder %s20, 0
      %p80 = por %p78, %p79
      %s81 = ssub.s32 %s21, %s33
      %s82 = ssub.s32 %s22, %s29
      %s83 = sor.u32 %s81, %s82
      %p84 = scmp.eq.s32.totalorder %s83, 0
      %s86 = sadd.s32 %s85, 1
      %s87 = scalar_select %p84, %s85, %s86
      %p90 = pneg %p84
      %p91 = scmp.eq.s32.totalorder %s14, 5
      %p92 = por %p90, %p91
      %p93 = scmp.ne.s32.totalorder %s85, %s88
      %p94 = scmp.eq.s32.totalorder %s14, 0
      %p95 = por %p93, %p94
      %p96 = scmp.ne.s32.totalorder %s85, %s88
      %p97 = scmp.eq.s32.totalorder %s19, 5
      %p98 = por %p96, %p97
      %p99 = scmp.ne.s32.totalorder %s88, %s89
      %p100 = scmp.eq.s32.totalorder %s19, 0
      %p101 = por %p99, %p100
      %p102 = scmp.ne.s32.totalorder %s88, %s89
      %p103 = scmp.eq.s32.totalorder %s20, 5
      %p104 = por %p102, %p103
      %p106 = scmp.ne.s32.totalorder %s89, %s105
      %p107 = scmp.eq.s32.totalorder %s20, 0
      %p108 = por %p106, %p107
      %p109 = scmp.le.s32.totalorder 1, %s14
      %p110 = scmp.lt.s32.totalorder %s14, 7
      %p111 = pnand %p109, %p110
      %p112 = pneg %p111
      // Predicated region
      $region9: #{tpu_custom_call.1} parent=5 // pred_check
        _
      $region10: #{tpu_custom_call.1} parent=5 // pred_check_branch
        %114 = sbr.rel (%p111) target = $region12
      $region11: #{tpu_custom_call.1} parent=5 // pred_region
        %s115 = ssub.s32 %s14, 1
        // Predicated region
        $region13: #{tpu_custom_call.1} parent=11 // pred_check
          %p116 = pneg %p73
        $region14: #{tpu_custom_call.1} parent=11 // pred_check_branch
          %118 = sbr.rel (%p116) target = $region16
        $region15: #{tpu_custom_call.1} parent=11 // pred_region
          _
        $region16: #{tpu_custom_call.1} parent=11 // pred_fallthru
          _
      $region12: #{tpu_custom_call.1} parent=5 // pred_fallthru
        _
      %p119 = scmp.lt.s32.totalorder %s14, 6
      // Predicated region
      $region17: #{tpu_custom_call.1} parent=5 // pred_check
        %p120 = pneg %p119
      $region18: #{tpu_custom_call.1} parent=5 // pred_check_branch
        %122 = sbr.rel (%p120) target = $region20
      $region19: #{tpu_custom_call.1} parent=5 // pred_region
        // Predicated region
        $region21: #{tpu_custom_call.1} parent=19 // pred_check
          %p123 = pneg %p46
        $region22: #{tpu_custom_call.1} parent=19 // pred_check_branch
          %125 = sbr.rel (%p123) target = $region24
        $region23: #{tpu_custom_call.1} parent=19 // pred_region
          %s126 = sand.u32 %s36, 1
          %s127 = scalar_lea.sflag [#allocation4], %s126
          %s128 = sand.u32 %s36, 1
          %s129 = smul.addr %s128, 8
          %s130 = scalar_lea.vmem [#allocation3], %s129
          %s132 = ssub.s32 128, 128
          %133 = vsyncadd %s127, %s132
          %s134 = smul.addr %s21, 2
          %s135 = smul.addr %s134, 64
          %s136 = scalar_lea.hbm %s0, %s135
          %s138 = sshll.u32 %s130, 4
          %s139 = int_to_ptr.vmem [resolvable:$true] %s138
          %141 = dma.hbm_to_vmem [thread:$0]  %s136, 128, %s139, %s127
        $region24: #{tpu_custom_call.1} parent=19 // pred_fallthru
          _
      $region20: #{tpu_custom_call.1} parent=5 // pred_fallthru
        _
      %p142 = scmp.le.s32.totalorder 1, %s14
      %p143 = scmp.lt.s32.totalorder %s14, 7
      %p144 = pnand %p142, %p143
      %p145 = pneg %p144
      // Predicated region
      $region25: #{tpu_custom_call.1} parent=5 // pred_check
        _
      $region26: #{tpu_custom_call.1} parent=5 // pred_check_branch
        %147 = sbr.rel (%p144) target = $region28
      $region27: #{tpu_custom_call.1} parent=5 // pred_region
        %s148 = ssub.s32 %s14, 1
        %s149 = sand.u32 %s39, 1
        %s150 = scalar_lea.sflag [#allocation4], %s149
        %s151 = sand.u32 %s39, 1
        %s152 = smul.addr %s151, 8
        %s153 = scalar_lea.vmem [#allocation3], %s152
        // Predicated region
        $region29: #{tpu_custom_call.1} parent=27 // pred_check
          %p154 = pneg %p52
        $region30: #{tpu_custom_call.1} parent=27 // pred_check_branch
          %156 = sbr.rel (%p154) target = $region32
        $region31: #{tpu_custom_call.1} parent=27 // pred_region
          %157 = dma.done %s150, 128
        $region32: #{tpu_custom_call.1} parent=27 // pred_fallthru
          _
        %s158 = sand.u32 %s39, 1
        %s159 = scalar_lea.sflag [#allocation4], %s158
        %s160 = sand.u32 %s39, 1
        %s161 = smul.addr %s160, 8
        %s162 = scalar_lea.vmem [#allocation3], %s161
        %p163 = pneg %p52
        %p164 = pneg %p49
        %p165 = pneg %p73
        %p166 = pneg %p70
        %p167 = pneg %p101
        %p168 = pneg %p98
        %s169 = sand.u32 %s88, 1
        %s170 = scalar_lea.sflag [#allocation5], %s169
        %s171 = sand.u32 %s88, 1
        %s172 = smul.addr %s171, 64
        %s173 = scalar_lea.vmem [#allocation6], %s172
        %v174 = vld [vmem:[%s153] sm:$0xff]
        %v175 = vsub.s32 1, %v174
        %v176 = vcvt.s32.f32 %v175
        %p177 = scmp.eq.s32.totalorder %s24, 0
        // Predicated region
        $region33: #{tpu_custom_call.1} parent=27 // pred_check
          %p178 = pneg %p177
        $region34: #{tpu_custom_call.1} parent=27 // pred_check_branch
          %180 = sbr.rel (%p178) target = $region36
        $region35: #{tpu_custom_call.1} parent=27 // pred_region
          %v182 = vcombine.high %v176, %v176
          %v183 = vrot.slane %v176, 7
          %v184 = vrot.slane %v182, 7
          %vm187 = vcmask 1040384
          %v188 = vsel %vm187, 0.0, %v183
          %v189 = vsel %vm187, 0.0, %v184
          %v192 = vcombine.low %v188, %v189
          %v194 = vadd.f32 %v176, %v192
          %v196 = vcombine.high %v194, %v194
          %v197 = vrot.slane %v194, 6
          %v198 = vrot.slane %v196, 6
          %vm201 = vcmask 1041408
          %v202 = vsel %vm201, 0.0, %v197
          %v203 = vsel %vm201, 0.0, %v198
          %v206 = vcombine.low %v202, %v203
          %v208 = vadd.f32 %v194, %v206
          %209 = vst [vmem:[#allocation2] sm:$0xff] %v208
        $region36: #{tpu_custom_call.1} parent=27 // pred_fallthru
          _
        %p210 = scmp.eq.s32.totalorder %s24, 1
        // Predicated region
        $region37: #{tpu_custom_call.1} parent=27 // pred_check
          %p211 = pneg %p210
        $region38: #{tpu_custom_call.1} parent=27 // pred_check_branch
          %213 = sbr.rel (%p211) target = $region40
        $region39: #{tpu_custom_call.1} parent=27 // pred_region
          %v215 = vcombine.high %v176, %v176
          %216 = vrot.lane.b32.xlu0 %v176, 16
          %v217 = vpop.permute.xlu0 %216
          %218 = vrot.lane.b32.xlu0 %v215, 16
          %v219 = vpop.permute.xlu0 %218
          %vm220 = vcmask 130048
          %v221 = vsel %vm220, %v217, %v219
          %v223 = vsel %vm220, 0.0, %v217
          %v225 = vcombine.low %v223, %v221
          %v227 = vadd.f32 %v176, %v225
          %v229 = vcombine.high %v227, %v227
          %230 = vrot.lane.b32.xlu0 %v227, 32
          %v231 = vpop.permute.xlu0 %230
          %232 = vrot.lane.b32.xlu0 %v229, 32
          %v233 = vpop.permute.xlu0 %232
          %vm234 = vcmask 261120
          %v235 = vsel %vm234, %v231, %v233
          %v237 = vsel %vm234, 0.0, %v231
          %v239 = vcombine.low %v237, %v235
          %v241 = vadd.f32 %v227, %v239
          %v243 = vcombine.high %v241, %v241
          %244 = vrot.lane.b32.xlu0 %v241, 64
          %v245 = vpop.permute.xlu0 %244
          %246 = vrot.lane.b32.xlu0 %v243, 64
          %v247 = vpop.permute.xlu0 %246
          %vm248 = vcmask 523264
          %v249 = vsel %vm248, %v245, %v247
          %v251 = vsel %vm248, 0.0, %v245
          %v253 = vcombine.low %v251, %v249
          %v255 = vadd.f32 %v241, %v253
          %v258 = vcombine.low 0.0, %v255
          %v260 = vadd.f32 %v255, %v258
          %261 = vst [vmem:[#allocation2] sm:$0xff] %v260
        $region40: #{tpu_custom_call.1} parent=27 // pred_fallthru
          _
        %p262 = scmp.eq.s32.totalorder %s24, 2
        // Predicated region
        $region41: #{tpu_custom_call.1} parent=27 // pred_check
          %p263 = pneg %p262
        $region42: #{tpu_custom_call.1} parent=27 // pred_check_branch
          %265 = sbr.rel (%p263) target = $region44
        $region43: #{tpu_custom_call.1} parent=27 // pred_region
          %v266 = vlaneseq
          %v267 = vand.u32 %v266, 127
          %v268 = vadd.s32 %v267, 128
          %v269 = vcvt.s32.f32 %v267
          %v270 = vcvt.s32.f32 %v268
          %v271 = vadd.f32 %v269, 0.5
          %v272 = vadd.f32 %v270, 0.5
          %v273 = vrcp.pop 16.0
          %v274 = vmul.f32 %v271, %v273
          %v275 = vmul.f32 %v272, %v273
          %v276 = vfloor.f32 %v274
          %v277 = vfloor.f32 %v275
          %v278 = vmul.f32 %v276, 16.0
          %v279 = vmul.f32 %v277, 16.0
          %v280 = vsub.f32 %v269, %v278
          %v281 = vsub.f32 %v270, %v279
          %vm282 = vcmp.ge.f32.partialorder %v280, 1.0
          %vm283 = vcmp.ge.f32.partialorder %v281, 1.0
          %v285 = vcombine.high %v176, %v176
          %286 = vrot.lane.b32.xlu0 %v176, 1
          %v287 = vpop.permute.xlu0 %286
          %288 = vrot.lane.b32.xlu0 %v285, 1
          %v289 = vpop.permute.xlu0 %288
          %vm290 = vcmask 7168
          %v291 = vsel %vm290, %v287, %v289
          %v294 = vsel %vm290, 0.0, %v287
          %v295 = vsel %vm282, %v294, 0.0
          %v296 = vsel %vm283, %v291, 0.0
          %v299 = vcombine.low %v295, %v296
          %v301 = vadd.f32 %v176, %v299
          %vm302 = vcmp.ge.f32.partialorder %v280, 2.0
          %vm303 = vcmp.ge.f32.partialorder %v281, 2.0
          %v305 = vcombine.high %v301, %v301
          %306 = vrot.lane.b32.xlu0 %v301, 2
          %v307 = vpop.permute.xlu0 %306
          %308 = vrot.lane.b32.xlu0 %v305, 2
          %v309 = vpop.permute.xlu0 %308
          %vm310 = vcmask 15360
          %v311 = vsel %vm310, %v307, %v309
          %v314 = vsel %vm310, 0.0, %v307
          %v315 = vsel %vm302, %v314, 0.0
          %v316 = vsel %vm303, %v311, 0.0
          %v319 = vcombine.low %v315, %v316
          %v321 = vadd.f32 %v301, %v319
          %vm322 = vcmp.ge.f32.partialorder %v280, 4.0
          %vm323 = vcmp.ge.f32.partialorder %v281, 4.0
          %v325 = vcombine.high %v321, %v321
          %326 = vrot.lane.b32.xlu0 %v321, 4
          %v327 = vpop.permute.xlu0 %326
          %328 = vrot.lane.b32.xlu0 %v325, 4
          %v329 = vpop.permute.xlu0 %328
          %vm330 = vcmask 31744
          %v331 = vsel %vm330, %v327, %v329
          %v334 = vsel %vm330, 0.0, %v327
          %v335 = vsel %vm322, %v334, 0.0
          %v336 = vsel %vm323, %v331, 0.0
          %v339 = vcombine.low %v335, %v336
          %v341 = vadd.f32 %v321, %v339
          %vm342 = vcmp.ge.f32.partialorder %v280, 8.0
          %vm343 = vcmp.ge.f32.partialorder %v281, 8.0
          %v345 = vcombine.high %v341, %v341
          %346 = vrot.lane.b32.xlu0 %v341, 8
          %v347 = vpop.permute.xlu0 %346
          %348 = vrot.lane.b32.xlu0 %v345, 8
          %v349 = vpop.permute.xlu0 %348
          %vm350 = vcmask 64512
          %v351 = vsel %vm350, %v347, %v349
          %v354 = vsel %vm350, 0.0, %v347
          %v355 = vsel %vm342, %v354, 0.0
          %v356 = vsel %vm343, %v351, 0.0
          %v359 = vcombine.low %v355, %v356
          %v361 = vadd.f32 %v341, %v359
          %362 = vst [vmem:[#allocation2] sm:$0xff] %v361
        $region44: #{tpu_custom_call.1} parent=27 // pred_fallthru
          _
        %v363 = vld [vmem:[#allocation2] sm:$0xff]
        %v364 = vld [vmem:[%s1] sm:$0xf]
        %v366 = vlaneseq
        %v367 = vshrl.u32 %v366, 7
        %v368 = vsub.s32 0, %v367
        %v369 = vrot.slane %v363, %v368
        %v370 = vlaneseq
        %v371 = vshrl.u32 %v370, 7
        %v372 = vsub.s32 4, %v371
        %v373 = vrot.slane %v363, %v372
        %v376 = vlaneseq
        %v377 = vshrl.u32 %v376, 7
        %v378 = vsub.s32 0, %v377
        %v379 = vrot.slane %v369, %v378
        %v380 = vlaneseq
        %v381 = vshrl.u32 %v380, 7
        %v382 = vsub.s32 0, %v381
        %v383 = vrot.slane %v373, %v382
        %385 = vset.pattern.permute.xlu0 0
        %386 = vperm.xlu0 %385, %v364
        %v387 = vpop.permute.xlu0 %386
        %v389 = vmul.f32 %v379, %v387
        %v390 = vmul.f32 %v383, %v387
        %v391 = vand.u32 2147483647, %v389
        %vm392 = vcmp.le.f32.partialorder %v391, 0.7853982
        %vm393 = vcmp.lt.s32.totalorder %v389, 0
        %v394 = vand.u32 %v389, 2139095040
        %v395 = vshrl.u32 %v394, 23
        %v396 = vsub.s32 %v395, 127
        %v397 = vand.u32 2147483647, %v389
        %v398 = vand.u32 %v397, 8388607
        %v399 = vor.u32 %v398, 8388608
        %v400 = vsub.s32 0, %v399
        %v401 = vadd.s32 %v396, 1
        %vm402 = vcmp.gt.s32.totalorder %v401, 0
        %v403 = vsel %vm402, %v401, 0
        %v404 = vshrl.u32 %v403, 5
        %v405 = vand.u32 %v403, 31
        %v406 = vsub.s32 32, %v405
        %v407 = vshrl.u32 683565275, %v406
        %v408 = vshll.u32 683565275, %v405
        %v409 = vshrl.u32 2475754826, %v406
        %v410 = vor.u32 %v408, %v409
        %v411 = vshll.u32 2475754826, %v405
        %v412 = vshrl.u32 2131351028, %v406
        %v413 = vor.u32 %v411, %v412
        %v414 = vshll.u32 2131351028, %v405
        %v415 = vshrl.u32 2102212464, %v406
        %v416 = vor.u32 %v414, %v415
        %v417 = vshll.u32 2102212464, %v405
        %v418 = vshrl.u32 920167782, %v406
        %v419 = vor.u32 %v417, %v418
        %v420 = vshll.u32 920167782, %v405
        %v421 = vshrl.u32 1326507024, %v406
        %v422 = vor.u32 %v420, %v421
        %vm423 = vcmp.lt.s32.totalorder %v404, 1
        %vm424 = vcmp.lt.s32.totalorder %v404, 2
        %vm425 = vcmp.lt.s32.totalorder %v404, 3
        %vm426 = vcmp.lt.s32.totalorder %v404, 4
        %v427 = vsel %vm423, %v407, %v410
        %v428 = vsel %vm426, %v416, 2102212464
        %v429 = vsel %vm425, %v413, %v428
        %v430 = vsel %vm424, %v427, %v429
        %v431 = vsel %vm423, %v410, %v413
        %v432 = vsel %vm426, %v419, 920167782
        %v433 = vsel %vm425, %v416, %v432
        %v434 = vsel %vm424, %v431, %v433
        %v435 = vsel %vm423, %v413, %v416
        %v436 = vsel %vm426, %v422, 1326507024
        %v437 = vsel %vm425, %v419, %v436
        %v438 = vsel %vm424, %v435, %v437
        %v439 = vshll.u32 %v399, 8
        %v440 = vmul.u32.u64.compose %v439, %v438
        %v441 = vextract.low.u32 %v440
        %v442 = vextract.high.u32 %v440
        %v443 = vmul.u32.u64.compose %v439, %v434
        %v444 = vextract.low.u32 %v443
        %v445 = vextract.high.u32 %v443
        %v446 = vmul.u32 %v439, %v430
        %v447 = vadd.s32 %v442, %v444
        %vm448 = vc.u32 %v442, %v444
        %v449 = vadd.s32 %v445, 1
        %v450 = vsel %vm448, %v449, %v445
        %v451 = vadd.s32 %v446, %v450
        %v452 = vadd.s32 %v451, 536870912
        %v453 = vshrl.u32 %v452, 30
        %v454 = vshll.u32 %v453, 30
        %v455 = vsub.s32 %v451, %v454
        %vm456 = vcmp.lt.s32.totalorder %v455, 0
        %v457 = vsub.s32 0, %v455
        %v458 = vsel %vm456, %v457, %v455
        %v459 = vclz %v458
        %v460 = vsub.s32 %v459, 2
        %vm461 = vcmp.gt.s32.totalorder 0, %v460
        %v462 = vsel %vm461, 0, %v460
        %v463 = vsub.s32 32, %v462
        %v464 = vshll.u32 %v455, %v462
        %v465 = vshrl.u32 %v447, %v463
        %v466 = vor.u32 %v464, %v465
        %v467 = vsub.s32 4294967266, %v462
        %v468 = vadd.s32 %v467, 127
        %v469 = vshll.u32 %v468, 23
        %v470 = vor.u32 4788187, %v469
        %v471 = vand.u32 2147483647, %v470
        %v473 = vcvt.s32.f32 %v466
        %v474 = vmul.f32 %v473, %v471
        %v475 = vxor.u32 %v474, 2147483648
        %v476 = vsel %vm393, %v475, %v474
        %v477 = vsub.s32 4, %v453
        %v478 = vsel %vm393, %v477, %v453
        %v479 = vsel %vm392, %v389, %v476
        %v480 = vsel %vm392, 0, %v478
        %v481 = vcosq.f32.pop %v479
        %v482 = vsinq.f32.pop %v479
        %vm483 = vweird.f32 %v389
        %v484 = vadd.s32 %v480, 3
        %v485 = vand.u32 %v484, 3
        %vm486 = vcmp.lt.s32.totalorder %v485, 2
        %vm487 = vcmp.eq.s32.totalorder %v485, 0
        %v488 = vxor.u32 %v482, 2147483648
        %v489 = vsel %vm487, %v481, %v488
        %vm490 = vcmp.eq.s32.totalorder %v485, 2
        %v491 = vxor.u32 %v481, 2147483648
        %v492 = vsel %vm490, %v491, %v482
        %v493 = vsel %vm486, %v489, %v492
        %v494 = vsel %vm483, nan, %v493
        %v495 = vand.u32 2147483647, %v390
        %vm496 = vcmp.le.f32.partialorder %v495, 0.7853982
        %vm497 = vcmp.lt.s32.totalorder %v390, 0
        %v498 = vand.u32 %v390, 2139095040
        %v499 = vshrl.u32 %v498, 23
        %v500 = vsub.s32 %v499, 127
        %v501 = vand.u32 2147483647, %v390
        %v502 = vand.u32 %v501, 8388607
        %v503 = vor.u32 %v502, 8388608
        %v504 = vsub.s32 0, %v503
        %v505 = vadd.s32 %v500, 1
        %vm506 = vcmp.gt.s32.totalorder %v505, 0
        %v507 = vsel %vm506, %v505, 0
        %v508 = vshrl.u32 %v507, 5
        %v509 = vand.u32 %v507, 31
        %v510 = vsub.s32 32, %v509
        %v511 = vshrl.u32 683565275, %v510
        %v512 = vshll.u32 683565275, %v509
        %v513 = vshrl.u32 2475754826, %v510
        %v514 = vor.u32 %v512, %v513
        %v515 = vshll.u32 2475754826, %v509
        %v516 = vshrl.u32 2131351028, %v510
        %v517 = vor.u32 %v515, %v516
        %v518 = vshll.u32 2131351028, %v509
        %v519 = vshrl.u32 2102212464, %v510
        %v520 = vor.u32 %v518, %v519
        %v521 = vshll.u32 2102212464, %v509
        %v522 = vshrl.u32 920167782, %v510
        %v523 = vor.u32 %v521, %v522
        %v524 = vshll.u32 920167782, %v509
        %v525 = vshrl.u32 1326507024, %v510
        %v526 = vor.u32 %v524, %v525
        %vm527 = vcmp.lt.s32.totalorder %v508, 1
        %vm528 = vcmp.lt.s32.totalorder %v508, 2
        %vm529 = vcmp.lt.s32.totalorder %v508, 3
        %vm530 = vcmp.lt.s32.totalorder %v508, 4
        %v531 = vsel %vm527, %v511, %v514
        %v532 = vsel %vm530, %v520, 2102212464
        %v533 = vsel %vm529, %v517, %v532
        %v534 = vsel %vm528, %v531, %v533
        %v535 = vsel %vm527, %v514, %v517
        %v536 = vsel %vm530, %v523, 920167782
        %v537 = vsel %vm529, %v520, %v536
        %v538 = vsel %vm528, %v535, %v537
        %v539 = vsel %vm527, %v517, %v520
        %v540 = vsel %vm530, %v526, 1326507024
        %v541 = vsel %vm529, %v523, %v540
        %v542 = vsel %vm528, %v539, %v541
        %v543 = vshll.u32 %v503, 8
        %v544 = vmul.u32.u64.compose %v543, %v542
        %v545 = vextract.low.u32 %v544
        %v546 = vextract.high.u32 %v544
        %v547 = vmul.u32.u64.compose %v543, %v538
        %v548 = vextract.low.u32 %v547
        %v549 = vextract.high.u32 %v547
        %v550 = vmul.u32 %v543, %v534
        %v551 = vadd.s32 %v546, %v548
        %vm552 = vc.u32 %v546, %v548
        %v553 = vadd.s32 %v549, 1
        %v554 = vsel %vm552, %v553, %v549
        %v555 = vadd.s32 %v550, %v554
        %v556 = vadd.s32 %v555, 536870912
        %v557 = vshrl.u32 %v556, 30
        %v558 = vshll.u32 %v557, 30
        %v559 = vsub.s32 %v555, %v558
        %vm560 = vcmp.lt.s32.totalorder %v559, 0
        %v561 = vsub.s32 0, %v559
        %v562 = vsel %vm560, %v561, %v559
        %v563 = vclz %v562
        %v564 = vsub.s32 %v563, 2
        %vm565 = vcmp.gt.s32.totalorder 0, %v564
        %v566 = vsel %vm565, 0, %v564
        %v567 = vsub.s32 32, %v566
        %v568 = vshll.u32 %v559, %v566
        %v569 = vshrl.u32 %v551, %v567
        %v570 = vor.u32 %v568, %v569
        %v571 = vsub.s32 4294967266, %v566
        %v572 = vadd.s32 %v571, 127
        %v573 = vshll.u32 %v572, 23
        %v574 = vor.u32 4788187, %v573
        %v575 = vand.u32 2147483647, %v574
        %v577 = vcvt.s32.f32 %v570
        %v578 = vmul.f32 %v577, %v575
        %v579 = vxor.u32 %v578, 2147483648
        %v580 = vsel %vm497, %v579, %v578
        %v581 = vsub.s32 4, %v557
        %v582 = vsel %vm497, %v581, %v557
        %v583 = vsel %vm496, %v390, %v580
        %v584 = vsel %vm496, 0, %v582
        %v585 = vcosq.f32.pop %v583
        %v586 = vsinq.f32.pop %v583
        %vm587 = vweird.f32 %v390
        %v588 = vadd.s32 %v584, 3
        %v589 = vand.u32 %v588, 3
        %vm590 = vcmp.lt.s32.totalorder %v589, 2
        %vm591 = vcmp.eq.s32.totalorder %v589, 0
        %v592 = vxor.u32 %v586, 2147483648
        %v593 = vsel %vm591, %v585, %v592
        %vm594 = vcmp.eq.s32.totalorder %v589, 2
        %v595 = vxor.u32 %v585, 2147483648
        %v596 = vsel %vm594, %v595, %v586
        %v597 = vsel %vm590, %v593, %v596
        %v598 = vsel %vm587, nan, %v597
        %599 = vst [vmem:[%s173] sm:$0xf] %v494
        %600 = vst [vmem:[%s173 + $0x8] sm:$0xf] %v598
        %v601 = vand.u32 2147483647, %v389
        %vm602 = vcmp.le.f32.partialorder %v601, 0.7853982
        %vm603 = vcmp.lt.s32.totalorder %v389, 0
        %v604 = vand.u32 %v389, 2139095040
        %v605 = vshrl.u32 %v604, 23
        %v606 = vsub.s32 %v605, 127
        %v607 = vand.u32 2147483647, %v389
        %v608 = vand.u32 %v607, 8388607
        %v609 = vor.u32 %v608, 8388608
        %v610 = vsub.s32 0, %v609
        %v611 = vadd.s32 %v606, 1
        %vm612 = vcmp.gt.s32.totalorder %v611, 0
        %v613 = vsel %vm612, %v611, 0
        %v614 = vshrl.u32 %v613, 5
        %v615 = vand.u32 %v613, 31
        %v616 = vsub.s32 32, %v615
        %v617 = vshrl.u32 683565275, %v616
        %v618 = vshll.u32 683565275, %v615
        %v619 = vshrl.u32 2475754826, %v616
        %v620 = vor.u32 %v618, %v619
        %v621 = vshll.u32 2475754826, %v615
        %v622 = vshrl.u32 2131351028, %v616
        %v623 = vor.u32 %v621, %v622
        %v624 = vshll.u32 2131351028, %v615
        %v625 = vshrl.u32 2102212464, %v616
        %v626 = vor.u32 %v624, %v625
        %v627 = vshll.u32 2102212464, %v615
        %v628 = vshrl.u32 920167782, %v616
        %v629 = vor.u32 %v627, %v628
        %v630 = vshll.u32 920167782, %v615
        %v631 = vshrl.u32 1326507024, %v616
        %v632 = vor.u32 %v630, %v631
        %vm633 = vcmp.lt.s32.totalorder %v614, 1
        %vm634 = vcmp.lt.s32.totalorder %v614, 2
        %vm635 = vcmp.lt.s32.totalorder %v614, 3
        %vm636 = vcmp.lt.s32.totalorder %v614, 4
        %v637 = vsel %vm633, %v617, %v620
        %v638 = vsel %vm636, %v626, 2102212464
        %v639 = vsel %vm635, %v623, %v638
        %v640 = vsel %vm634, %v637, %v639
        %v641 = vsel %vm633, %v620, %v623
        %v642 = vsel %vm636, %v629, 920167782
        %v643 = vsel %vm635, %v626, %v642
        %v644 = vsel %vm634, %v641, %v643
        %v645 = vsel %vm633, %v623, %v626
        %v646 = vsel %vm636, %v632, 1326507024
        %v647 = vsel %vm635, %v629, %v646
        %v648 = vsel %vm634, %v645, %v647
        %v649 = vshll.u32 %v609, 8
        %v650 = vmul.u32.u64.compose %v649, %v648
        %v651 = vextract.low.u32 %v650
        %v652 = vextract.high.u32 %v650
        %v653 = vmul.u32.u64.compose %v649, %v644
        %v654 = vextract.low.u32 %v653
        %v655 = vextract.high.u32 %v653
        %v656 = vmul.u32 %v649, %v640
        %v657 = vadd.s32 %v652, %v654
        %vm658 = vc.u32 %v652, %v654
        %v659 = vadd.s32 %v655, 1
        %v660 = vsel %vm658, %v659, %v655
        %v661 = vadd.s32 %v656, %v660
        %v662 = vadd.s32 %v661, 536870912
        %v663 = vshrl.u32 %v662, 30
        %v664 = vshll.u32 %v663, 30
        %v665 = vsub.s32 %v661, %v664
        %vm666 = vcmp.lt.s32.totalorder %v665, 0
        %v667 = vsub.s32 0, %v665
        %v668 = vsel %vm666, %v667, %v665
        %v669 = vclz %v668
        %v670 = vsub.s32 %v669, 2
        %vm671 = vcmp.gt.s32.totalorder 0, %v670
        %v672 = vsel %vm671, 0, %v670
        %v673 = vsub.s32 32, %v672
        %v674 = vshll.u32 %v665, %v672
        %v675 = vshrl.u32 %v657, %v673
        %v676 = vor.u32 %v674, %v675
        %v677 = vsub.s32 4294967266, %v672
        %v678 = vadd.s32 %v677, 127
        %v679 = vshll.u32 %v678, 23
        %v680 = vor.u32 4788187, %v679
        %v681 = vand.u32 2147483647, %v680
        %v683 = vcvt.s32.f32 %v676
        %v684 = vmul.f32 %v683, %v681
        %v685 = vxor.u32 %v684, 2147483648
        %v686 = vsel %vm603, %v685, %v684
        %v687 = vsub.s32 4, %v663
        %v688 = vsel %vm603, %v687, %v663
        %v689 = vsel %vm602, %v389, %v686
        %v690 = vsel %vm602, 0, %v688
        %v691 = vcosq.f32.pop %v689
        %v692 = vsinq.f32.pop %v689
        %vm693 = vweird.f32 %v389
        %v694 = vand.u32 %v690, 3
        %vm695 = vcmp.lt.s32.totalorder %v694, 2
        %vm696 = vcmp.eq.s32.totalorder %v694, 0
        %v697 = vxor.u32 %v692, 2147483648
        %v698 = vsel %vm696, %v691, %v697
        %vm699 = vcmp.eq.s32.totalorder %v694, 2
        %v700 = vxor.u32 %v691, 2147483648
        %v701 = vsel %vm699, %v700, %v692
        %v702 = vsel %vm695, %v698, %v701
        %v703 = vsel %vm693, nan, %v702
        %v704 = vand.u32 2147483647, %v390
        %vm705 = vcmp.le.f32.partialorder %v704, 0.7853982
        %vm706 = vcmp.lt.s32.totalorder %v390, 0
        %v707 = vand.u32 %v390, 2139095040
        %v708 = vshrl.u32 %v707, 23
        %v709 = vsub.s32 %v708, 127
        %v710 = vand.u32 2147483647, %v390
        %v711 = vand.u32 %v710, 8388607
        %v712 = vor.u32 %v711, 8388608
        %v713 = vsub.s32 0, %v712
        %v714 = vadd.s32 %v709, 1
        %vm715 = vcmp.gt.s32.totalorder %v714, 0
        %v716 = vsel %vm715, %v714, 0
        %v717 = vshrl.u32 %v716, 5
        %v718 = vand.u32 %v716, 31
        %v719 = vsub.s32 32, %v718
        %v720 = vshrl.u32 683565275, %v719
        %v721 = vshll.u32 683565275, %v718
        %v722 = vshrl.u32 2475754826, %v719
        %v723 = vor.u32 %v721, %v722
        %v724 = vshll.u32 2475754826, %v718
        %v725 = vshrl.u32 2131351028, %v719
        %v726 = vor.u32 %v724, %v725
        %v727 = vshll.u32 2131351028, %v718
        %v728 = vshrl.u32 2102212464, %v719
        %v729 = vor.u32 %v727, %v728
        %v730 = vshll.u32 2102212464, %v718
        %v731 = vshrl.u32 920167782, %v719
        %v732 = vor.u32 %v730, %v731
        %v733 = vshll.u32 920167782, %v718
        %v734 = vshrl.u32 1326507024, %v719
        %v735 = vor.u32 %v733, %v734
        %vm736 = vcmp.lt.s32.totalorder %v717, 1
        %vm737 = vcmp.lt.s32.totalorder %v717, 2
        %vm738 = vcmp.lt.s32.totalorder %v717, 3
        %vm739 = vcmp.lt.s32.totalorder %v717, 4
        %v740 = vsel %vm736, %v720, %v723
        %v741 = vsel %vm739, %v729, 2102212464
        %v742 = vsel %vm738, %v726, %v741
        %v743 = vsel %vm737, %v740, %v742
        %v744 = vsel %vm736, %v723, %v726
        %v745 = vsel %vm739, %v732, 920167782
        %v746 = vsel %vm738, %v729, %v745
        %v747 = vsel %vm737, %v744, %v746
        %v748 = vsel %vm736, %v726, %v729
        %v749 = vsel %vm739, %v735, 1326507024
        %v750 = vsel %vm738, %v732, %v749
        %v751 = vsel %vm737, %v748, %v750
        %v752 = vshll.u32 %v712, 8
        %v753 = vmul.u32.u64.compose %v752, %v751
        %v754 = vextract.low.u32 %v753
        %v755 = vextract.high.u32 %v753
        %v756 = vmul.u32.u64.compose %v752, %v747
        %v757 = vextract.low.u32 %v756
        %v758 = vextract.high.u32 %v756
        %v759 = vmul.u32 %v752, %v743
        %v760 = vadd.s32 %v755, %v757
        %vm761 = vc.u32 %v755, %v757
        %v762 = vadd.s32 %v758, 1
        %v763 = vsel %vm761, %v762, %v758
        %v764 = vadd.s32 %v759, %v763
        %v765 = vadd.s32 %v764, 536870912
        %v766 = vshrl.u32 %v765, 30
        %v767 = vshll.u32 %v766, 30
        %v768 = vsub.s32 %v764, %v767
        %vm769 = vcmp.lt.s32.totalorder %v768, 0
        %v770 = vsub.s32 0, %v768
        %v771 = vsel %vm769, %v770, %v768
        %v772 = vclz %v771
        %v773 = vsub.s32 %v772, 2
        %vm774 = vcmp.gt.s32.totalorder 0, %v773
        %v775 = vsel %vm774, 0, %v773
        %v776 = vsub.s32 32, %v775
        %v777 = vshll.u32 %v768, %v775
        %v778 = vshrl.u32 %v760, %v776
        %v779 = vor.u32 %v777, %v778
        %v780 = vsub.s32 4294967266, %v775
        %v781 = vadd.s32 %v780, 127
        %v782 = vshll.u32 %v781, 23
        %v783 = vor.u32 4788187, %v782
        %v784 = vand.u32 2147483647, %v783
        %v786 = vcvt.s32.f32 %v779
        %v787 = vmul.f32 %v786, %v784
        %v788 = vxor.u32 %v787, 2147483648
        %v789 = vsel %vm706, %v788, %v787
        %v790 = vsub.s32 4, %v766
        %v791 = vsel %vm706, %v790, %v766
        %v792 = vsel %vm705, %v390, %v789
        %v793 = vsel %vm705, 0, %v791
        %v794 = vcosq.f32.pop %v792
        %v795 = vsinq.f32.pop %v792
        %vm796 = vweird.f32 %v390
        %v797 = vand.u32 %v793, 3
        %vm798 = vcmp.lt.s32.totalorder %v797, 2
        %vm799 = vcmp.eq.s32.totalorder %v797, 0
        %v800 = vxor.u32 %v795, 2147483648
        %v801 = vsel %vm799, %v794, %v800
        %vm802 = vcmp.eq.s32.totalorder %v797, 2
        %v803 = vxor.u32 %v794, 2147483648
        %v804 = vsel %vm802, %v803, %v795
        %v805 = vsel %vm798, %v801, %v804
        %v806 = vsel %vm796, nan, %v805
        %v809 = vrot.slane %v703, 4
        %v810 = vrot.slane %v806, 4
        %813 = vst [vmem:[%s173] sm:$0xf0] %v809
        %814 = vst [vmem:[%s173 + $0x8] sm:$0xf0] %v810
        %v815 = vlaneseq
        %v816 = vshrl.u32 %v815, 7
        %v817 = vsub.s32 1, %v816
        %v818 = vrot.slane %v363, %v817
        %v819 = vlaneseq
        %v820 = vshrl.u32 %v819, 7
        %v821 = vsub.s32 5, %v820
        %v822 = vrot.slane %v363, %v821
        %v825 = vlaneseq
        %v826 = vshrl.u32 %v825, 7
        %v827 = vsub.s32 1, %v826
        %v828 = vrot.slane %v818, %v827
        %v829 = vlaneseq
        %v830 = vshrl.u32 %v829, 7
        %v831 = vsub.s32 1, %v830
        %v832 = vrot.slane %v822, %v831
        %v833 = vmul.f32 %v828, %v387
        %v834 = vmul.f32 %v832, %v387
        %v835 = vand.u32 2147483647, %v833
        %vm836 = vcmp.le.f32.partialorder %v835, 0.7853982
        %vm837 = vcmp.lt.s32.totalorder %v833, 0
        %v838 = vand.u32 %v833, 2139095040
        %v839 = vshrl.u32 %v838, 23
        %v840 = vsub.s32 %v839, 127
        %v841 = vand.u32 2147483647, %v833
        %v842 = vand.u32 %v841, 8388607
        %v843 = vor.u32 %v842, 8388608
        %v844 = vsub.s32 0, %v843
        %v845 = vadd.s32 %v840, 1
        %vm846 = vcmp.gt.s32.totalorder %v845, 0
        %v847 = vsel %vm846, %v845, 0
        %v848 = vshrl.u32 %v847, 5
        %v849 = vand.u32 %v847, 31
        %v850 = vsub.s32 32, %v849
        %v851 = vshrl.u32 683565275, %v850
        %v852 = vshll.u32 683565275, %v849
        %v853 = vshrl.u32 2475754826, %v850
        %v854 = vor.u32 %v852, %v853
        %v855 = vshll.u32 2475754826, %v849
        %v856 = vshrl.u32 2131351028, %v850
        %v857 = vor.u32 %v855, %v856
        %v858 = vshll.u32 2131351028, %v849
        %v859 = vshrl.u32 2102212464, %v850
        %v860 = vor.u32 %v858, %v859
        %v861 = vshll.u32 2102212464, %v849
        %v862 = vshrl.u32 920167782, %v850
        %v863 = vor.u32 %v861, %v862
        %v864 = vshll.u32 920167782, %v849
        %v865 = vshrl.u32 1326507024, %v850
        %v866 = vor.u32 %v864, %v865
        %vm867 = vcmp.lt.s32.totalorder %v848, 1
        %vm868 = vcmp.lt.s32.totalorder %v848, 2
        %vm869 = vcmp.lt.s32.totalorder %v848, 3
        %vm870 = vcmp.lt.s32.totalorder %v848, 4
        %v871 = vsel %vm867, %v851, %v854
        %v872 = vsel %vm870, %v860, 2102212464
        %v873 = vsel %vm869, %v857, %v872
        %v874 = vsel %vm868, %v871, %v873
        %v875 = vsel %vm867, %v854, %v857
        %v876 = vsel %vm870, %v863, 920167782
        %v877 = vsel %vm869, %v860, %v876
        %v878 = vsel %vm868, %v875, %v877
        %v879 = vsel %vm867, %v857, %v860
        %v880 = vsel %vm870, %v866, 1326507024
        %v881 = vsel %vm869, %v863, %v880
        %v882 = vsel %vm868, %v879, %v881
        %v883 = vshll.u32 %v843, 8
        %v884 = vmul.u32.u64.compose %v883, %v882
        %v885 = vextract.low.u32 %v884
        %v886 = vextract.high.u32 %v884
        %v887 = vmul.u32.u64.compose %v883, %v878
        %v888 = vextract.low.u32 %v887
        %v889 = vextract.high.u32 %v887
        %v890 = vmul.u32 %v883, %v874
        %v891 = vadd.s32 %v886, %v888
        %vm892 = vc.u32 %v886, %v888
        %v893 = vadd.s32 %v889, 1
        %v894 = vsel %vm892, %v893, %v889
        %v895 = vadd.s32 %v890, %v894
        %v896 = vadd.s32 %v895, 536870912
        %v897 = vshrl.u32 %v896, 30
        %v898 = vshll.u32 %v897, 30
        %v899 = vsub.s32 %v895, %v898
        %vm900 = vcmp.lt.s32.totalorder %v899, 0
        %v901 = vsub.s32 0, %v899
        %v902 = vsel %vm900, %v901, %v899
        %v903 = vclz %v902
        %v904 = vsub.s32 %v903, 2
        %vm905 = vcmp.gt.s32.totalorder 0, %v904
        %v906 = vsel %vm905, 0, %v904
        %v907 = vsub.s32 32, %v906
        %v908 = vshll.u32 %v899, %v906
        %v909 = vshrl.u32 %v891, %v907
        %v910 = vor.u32 %v908, %v909
        %v911 = vsub.s32 4294967266, %v906
        %v912 = vadd.s32 %v911, 127
        %v913 = vshll.u32 %v912, 23
        %v914 = vor.u32 4788187, %v913
        %v915 = vand.u32 2147483647, %v914
        %v917 = vcvt.s32.f32 %v910
        %v918 = vmul.f32 %v917, %v915
        %v919 = vxor.u32 %v918, 2147483648
        %v920 = vsel %vm837, %v919, %v918
        %v921 = vsub.s32 4, %v897
        %v922 = vsel %vm837, %v921, %v897
        %v923 = vsel %vm836, %v833, %v920
        %v924 = vsel %vm836, 0, %v922
        %v925 = vcosq.f32.pop %v923
        %v926 = vsinq.f32.pop %v923
        %vm927 = vweird.f32 %v833
        %v928 = vadd.s32 %v924, 3
        %v929 = vand.u32 %v928, 3
        %vm930 = vcmp.lt.s32.totalorder %v929, 2
        %vm931 = vcmp.eq.s32.totalorder %v929, 0
        %v932 = vxor.u32 %v926, 2147483648
        %v933 = vsel %vm931, %v925, %v932
        %vm934 = vcmp.eq.s32.totalorder %v929, 2
        %v935 = vxor.u32 %v925, 2147483648
        %v936 = vsel %vm934, %v935, %v926
        %v937 = vsel %vm930, %v933, %v936
        %v938 = vsel %vm927, nan, %v937
        %v939 = vand.u32 2147483647, %v834
        %vm940 = vcmp.le.f32.partialorder %v939, 0.7853982
        %vm941 = vcmp.lt.s32.totalorder %v834, 0
        %v942 = vand.u32 %v834, 2139095040
        %v943 = vshrl.u32 %v942, 23
        %v944 = vsub.s32 %v943, 127
        %v945 = vand.u32 2147483647, %v834
        %v946 = vand.u32 %v945, 8388607
        %v947 = vor.u32 %v946, 8388608
        %v948 = vsub.s32 0, %v947
        %v949 = vadd.s32 %v944, 1
        %vm950 = vcmp.gt.s32.totalorder %v949, 0
        %v951 = vsel %vm950, %v949, 0
        %v952 = vshrl.u32 %v951, 5
        %v953 = vand.u32 %v951, 31
        %v954 = vsub.s32 32, %v953
        %v955 = vshrl.u32 683565275, %v954
        %v956 = vshll.u32 683565275, %v953
        %v957 = vshrl.u32 2475754826, %v954
        %v958 = vor.u32 %v956, %v957
        %v959 = vshll.u32 2475754826, %v953
        %v960 = vshrl.u32 2131351028, %v954
        %v961 = vor.u32 %v959, %v960
        %v962 = vshll.u32 2131351028, %v953
        %v963 = vshrl.u32 2102212464, %v954
        %v964 = vor.u32 %v962, %v963
        %v965 = vshll.u32 2102212464, %v953
        %v966 = vshrl.u32 920167782, %v954
        %v967 = vor.u32 %v965, %v966
        %v968 = vshll.u32 920167782, %v953
        %v969 = vshrl.u32 1326507024, %v954
        %v970 = vor.u32 %v968, %v969
        %vm971 = vcmp.lt.s32.totalorder %v952, 1
        %vm972 = vcmp.lt.s32.totalorder %v952, 2
        %vm973 = vcmp.lt.s32.totalorder %v952, 3
        %vm974 = vcmp.lt.s32.totalorder %v952, 4
        %v975 = vsel %vm971, %v955, %v958
        %v976 = vsel %vm974, %v964, 2102212464
        %v977 = vsel %vm973, %v961, %v976
        %v978 = vsel %vm972, %v975, %v977
        %v979 = vsel %vm971, %v958, %v961
        %v980 = vsel %vm974, %v967, 920167782
        %v981 = vsel %vm973, %v964, %v980
        %v982 = vsel %vm972, %v979, %v981
        %v983 = vsel %vm971, %v961, %v964
        %v984 = vsel %vm974, %v970, 1326507024
        %v985 = vsel %vm973, %v967, %v984
        %v986 = vsel %vm972, %v983, %v985
        %v987 = vshll.u32 %v947, 8
        %v988 = vmul.u32.u64.compose %v987, %v986
        %v989 = vextract.low.u32 %v988
        %v990 = vextract.high.u32 %v988
        %v991 = vmul.u32.u64.compose %v987, %v982
        %v992 = vextract.low.u32 %v991
        %v993 = vextract.high.u32 %v991
        %v994 = vmul.u32 %v987, %v978
        %v995 = vadd.s32 %v990, %v992
        %vm996 = vc.u32 %v990, %v992
        %v997 = vadd.s32 %v993, 1
        %v998 = vsel %vm996, %v997, %v993
        %v999 = vadd.s32 %v994, %v998
        %v1000 = vadd.s32 %v999, 536870912
        %v1001 = vshrl.u32 %v1000, 30
        %v1002 = vshll.u32 %v1001, 30
        %v1003 = vsub.s32 %v999, %v1002
        %vm1004 = vcmp.lt.s32.totalorder %v1003, 0
        %v1005 = vsub.s32 0, %v1003
        %v1006 = vsel %vm1004, %v1005, %v1003
        %v1007 = vclz %v1006
        %v1008 = vsub.s32 %v1007, 2
        %vm1009 = vcmp.gt.s32.totalorder 0, %v1008
        %v1010 = vsel %vm1009, 0, %v1008
        %v1011 = vsub.s32 32, %v1010
        %v1012 = vshll.u32 %v1003, %v1010
        %v1013 = vshrl.u32 %v995, %v1011
        %v1014 = vor.u32 %v1012, %v1013
        %v1015 = vsub.s32 4294967266, %v1010
        %v1016 = vadd.s32 %v1015, 127
        %v1017 = vshll.u32 %v1016, 23
        %v1018 = vor.u32 4788187, %v1017
        %v1019 = vand.u32 2147483647, %v1018
        %v1021 = vcvt.s32.f32 %v1014
        %v1022 = vmul.f32 %v1021, %v1019
        %v1023 = vxor.u32 %v1022, 2147483648
        %v1024 = vsel %vm941, %v1023, %v1022
        %v1025 = vsub.s32 4, %v1001
        %v1026 = vsel %vm941, %v1025, %v1001
        %v1027 = vsel %vm940, %v834, %v1024
        %v1028 = vsel %vm940, 0, %v1026
        %v1029 = vcosq.f32.pop %v1027
        %v1030 = vsinq.f32.pop %v1027
        %vm1031 = vweird.f32 %v834
        %v1032 = vadd.s32 %v1028, 3
        %v1033 = vand.u32 %v1032, 3
        %vm1034 = vcmp.lt.s32.totalorder %v1033, 2
        %vm1035 = vcmp.eq.s32.totalorder %v1033, 0
        %v1036 = vxor.u32 %v1030, 2147483648
        %v1037 = vsel %vm1035, %v1029, %v1036
        %vm1038 = vcmp.eq.s32.totalorder %v1033, 2
        %v1039 = vxor.u32 %v1029, 2147483648
        %v1040 = vsel %vm1038, %v1039, %v1030
        %v1041 = vsel %vm1034, %v1037, %v1040
        %v1042 = vsel %vm1031, nan, %v1041
        %s1043 = scalar_lea.vmem %s173, 16 [#allocation6]
        %1044 = vst [vmem:[%s1043] sm:$0xf] %v938
        %1045 = vst [vmem:[%s1043 + $0x8] sm:$0xf] %v1042
        %v1046 = vand.u32 2147483647, %v833
        %vm1047 = vcmp.le.f32.partialorder %v1046, 0.7853982
        %vm1048 = vcmp.lt.s32.totalorder %v833, 0
        %v1049 = vand.u32 %v833, 2139095040
        %v1050 = vshrl.u32 %v1049, 23
        %v1051 = vsub.s32 %v1050, 127
        %v1052 = vand.u32 2147483647, %v833
        %v1053 = vand.u32 %v1052, 8388607
        %v1054 = vor.u32 %v1053, 8388608
        %v1055 = vsub.s32 0, %v1054
        %v1056 = vadd.s32 %v1051, 1
        %vm1057 = vcmp.gt.s32.totalorder %v1056, 0
        %v1058 = vsel %vm1057, %v1056, 0
        %v1059 = vshrl.u32 %v1058, 5
        %v1060 = vand.u32 %v1058, 31
        %v1061 = vsub.s32 32, %v1060
        %v1062 = vshrl.u32 683565275, %v1061
        %v1063 = vshll.u32 683565275, %v1060
        %v1064 = vshrl.u32 2475754826, %v1061
        %v1065 = vor.u32 %v1063, %v1064
        %v1066 = vshll.u32 2475754826, %v1060
        %v1067 = vshrl.u32 2131351028, %v1061
        %v1068 = vor.u32 %v1066, %v1067
        %v1069 = vshll.u32 2131351028, %v1060
        %v1070 = vshrl.u32 2102212464, %v1061
        %v1071 = vor.u32 %v1069, %v1070
        %v1072 = vshll.u32 2102212464, %v1060
        %v1073 = vshrl.u32 920167782, %v1061
        %v1074 = vor.u32 %v1072, %v1073
        %v1075 = vshll.u32 920167782, %v1060
        %v1076 = vshrl.u32 1326507024, %v1061
        %v1077 = vor.u32 %v1075, %v1076
        %vm1078 = vcmp.lt.s32.totalorder %v1059, 1
        %vm1079 = vcmp.lt.s32.totalorder %v1059, 2
        %vm1080 = vcmp.lt.s32.totalorder %v1059, 3
        %vm1081 = vcmp.lt.s32.totalorder %v1059, 4
        %v1082 = vsel %vm1078, %v1062, %v1065
        %v1083 = vsel %vm1081, %v1071, 2102212464
        %v1084 = vsel %vm1080, %v1068, %v1083
        %v1085 = vsel %vm1079, %v1082, %v1084
        %v1086 = vsel %vm1078, %v1065, %v1068
        %v1087 = vsel %vm1081, %v1074, 920167782
        %v1088 = vsel %vm1080, %v1071, %v1087
        %v1089 = vsel %vm1079, %v1086, %v1088
        %v1090 = vsel %vm1078, %v1068, %v1071
        %v1091 = vsel %vm1081, %v1077, 1326507024
        %v1092 = vsel %vm1080, %v1074, %v1091
        %v1093 = vsel %vm1079, %v1090, %v1092
        %v1094 = vshll.u32 %v1054, 8
        %v1095 = vmul.u32.u64.compose %v1094, %v1093
        %v1096 = vextract.low.u32 %v1095
        %v1097 = vextract.high.u32 %v1095
        %v1098 = vmul.u32.u64.compose %v1094, %v1089
        %v1099 = vextract.low.u32 %v1098
        %v1100 = vextract.high.u32 %v1098
        %v1101 = vmul.u32 %v1094, %v1085
        %v1102 = vadd.s32 %v1097, %v1099
        %vm1103 = vc.u32 %v1097, %v1099
        %v1104 = vadd.s32 %v1100, 1
        %v1105 = vsel %vm1103, %v1104, %v1100
        %v1106 = vadd.s32 %v1101, %v1105
        %v1107 = vadd.s32 %v1106, 536870912
        %v1108 = vshrl.u32 %v1107, 30
        %v1109 = vshll.u32 %v1108, 30
        %v1110 = vsub.s32 %v1106, %v1109
        %vm1111 = vcmp.lt.s32.totalorder %v1110, 0
        %v1112 = vsub.s32 0, %v1110
        %v1113 = vsel %vm1111, %v1112, %v1110
        %v1114 = vclz %v1113
        %v1115 = vsub.s32 %v1114, 2
        %vm1116 = vcmp.gt.s32.totalorder 0, %v1115
        %v1117 = vsel %vm1116, 0, %v1115
        %v1118 = vsub.s32 32, %v1117
        %v1119 = vshll.u32 %v1110, %v1117
        %v1120 = vshrl.u32 %v1102, %v1118
        %v1121 = vor.u32 %v1119, %v1120
        %v1122 = vsub.s32 4294967266, %v1117
        %v1123 = vadd.s32 %v1122, 127
        %v1124 = vshll.u32 %v1123, 23
        %v1125 = vor.u32 4788187, %v1124
        %v1126 = vand.u32 2147483647, %v1125
        %v1128 = vcvt.s32.f32 %v1121
        %v1129 = vmul.f32 %v1128, %v1126
        %v1130 = vxor.u32 %v1129, 2147483648
        %v1131 = vsel %vm1048, %v1130, %v1129
        %v1132 = vsub.s32 4, %v1108
        %v1133 = vsel %vm1048, %v1132, %v1108
        %v1134 = vsel %vm1047, %v833, %v1131
        %v1135 = vsel %vm1047, 0, %v1133
        %v1136 = vcosq.f32.pop %v1134
        %v1137 = vsinq.f32.pop %v1134
        %vm1138 = vweird.f32 %v833
        %v1139 = vand.u32 %v1135, 3
        %vm1140 = vcmp.lt.s32.totalorder %v1139, 2
        %vm1141 = vcmp.eq.s32.totalorder %v1139, 0
        %v1142 = vxor.u32 %v1137, 2147483648
        %v1143 = vsel %vm1141, %v1136, %v1142
        %vm1144 = vcmp.eq.s32.totalorder %v1139, 2
        %v1145 = vxor.u32 %v1136, 2147483648
        %v1146 = vsel %vm1144, %v1145, %v1137
        %v1147 = vsel %vm1140, %v1143, %v1146
        %v1148 = vsel %vm1138, nan, %v1147
        %v1149 = vand.u32 2147483647, %v834
        %vm1150 = vcmp.le.f32.partialorder %v1149, 0.7853982
        %vm1151 = vcmp.lt.s32.totalorder %v834, 0
        %v1152 = vand.u32 %v834, 2139095040
        %v1153 = vshrl.u32 %v1152, 23
        %v1154 = vsub.s32 %v1153, 127
        %v1155 = vand.u32 2147483647, %v834
        %v1156 = vand.u32 %v1155, 8388607
        %v1157 = vor.u32 %v1156, 8388608
        %v1158 = vsub.s32 0, %v1157
        %v1159 = vadd.s32 %v1154, 1
        %vm1160 = vcmp.gt.s32.totalorder %v1159, 0
        %v1161 = vsel %vm1160, %v1159, 0
        %v1162 = vshrl.u32 %v1161, 5
        %v1163 = vand.u32 %v1161, 31
        %v1164 = vsub.s32 32, %v1163
        %v1165 = vshrl.u32 683565275, %v1164
        %v1166 = vshll.u32 683565275, %v1163
        %v1167 = vshrl.u32 2475754826, %v1164
        %v1168 = vor.u32 %v1166, %v1167
        %v1169 = vshll.u32 2475754826, %v1163
        %v1170 = vshrl.u32 2131351028, %v1164
        %v1171 = vor.u32 %v1169, %v1170
        %v1172 = vshll.u32 2131351028, %v1163
        %v1173 = vshrl.u32 2102212464, %v1164
        %v1174 = vor.u32 %v1172, %v1173
        %v1175 = vshll.u32 2102212464, %v1163
        %v1176 = vshrl.u32 920167782, %v1164
        %v1177 = vor.u32 %v1175, %v1176
        %v1178 = vshll.u32 920167782, %v1163
        %v1179 = vshrl.u32 1326507024, %v1164
        %v1180 = vor.u32 %v1178, %v1179
        %vm1181 = vcmp.lt.s32.totalorder %v1162, 1
        %vm1182 = vcmp.lt.s32.totalorder %v1162, 2
        %vm1183 = vcmp.lt.s32.totalorder %v1162, 3
        %vm1184 = vcmp.lt.s32.totalorder %v1162, 4
        %v1185 = vsel %vm1181, %v1165, %v1168
        %v1186 = vsel %vm1184, %v1174, 2102212464
        %v1187 = vsel %vm1183, %v1171, %v1186
        %v1188 = vsel %vm1182, %v1185, %v1187
        %v1189 = vsel %vm1181, %v1168, %v1171
        %v1190 = vsel %vm1184, %v1177, 920167782
        %v1191 = vsel %vm1183, %v1174, %v1190
        %v1192 = vsel %vm1182, %v1189, %v1191
        %v1193 = vsel %vm1181, %v1171, %v1174
        %v1194 = vsel %vm1184, %v1180, 1326507024
        %v1195 = vsel %vm1183, %v1177, %v1194
        %v1196 = vsel %vm1182, %v1193, %v1195
        %v1197 = vshll.u32 %v1157, 8
        %v1198 = vmul.u32.u64.compose %v1197, %v1196
        %v1199 = vextract.low.u32 %v1198
        %v1200 = vextract.high.u32 %v1198
        %v1201 = vmul.u32.u64.compose %v1197, %v1192
        %v1202 = vextract.low.u32 %v1201
        %v1203 = vextract.high.u32 %v1201
        %v1204 = vmul.u32 %v1197, %v1188
        %v1205 = vadd.s32 %v1200, %v1202
        %vm1206 = vc.u32 %v1200, %v1202
        %v1207 = vadd.s32 %v1203, 1
        %v1208 = vsel %vm1206, %v1207, %v1203
        %v1209 = vadd.s32 %v1204, %v1208
        %v1210 = vadd.s32 %v1209, 536870912
        %v1211 = vshrl.u32 %v1210, 30
        %v1212 = vshll.u32 %v1211, 30
        %v1213 = vsub.s32 %v1209, %v1212
        %vm1214 = vcmp.lt.s32.totalorder %v1213, 0
        %v1215 = vsub.s32 0, %v1213
        %v1216 = vsel %vm1214, %v1215, %v1213
        %v1217 = vclz %v1216
        %v1218 = vsub.s32 %v1217, 2
        %vm1219 = vcmp.gt.s32.totalorder 0, %v1218
        %v1220 = vsel %vm1219, 0, %v1218
        %v1221 = vsub.s32 32, %v1220
        %v1222 = vshll.u32 %v1213, %v1220
        %v1223 = vshrl.u32 %v1205, %v1221
        %v1224 = vor.u32 %v1222, %v1223
        %v1225 = vsub.s32 4294967266, %v1220
        %v1226 = vadd.s32 %v1225, 127
        %v1227 = vshll.u32 %v1226, 23
        %v1228 = vor.u32 4788187, %v1227
        %v1229 = vand.u32 2147483647, %v1228
        %v1231 = vcvt.s32.f32 %v1224
        %v1232 = vmul.f32 %v1231, %v1229
        %v1233 = vxor.u32 %v1232, 2147483648
        %v1234 = vsel %vm1151, %v1233, %v1232
        %v1235 = vsub.s32 4, %v1211
        %v1236 = vsel %vm1151, %v1235, %v1211
        %v1237 = vsel %vm1150, %v834, %v1234
        %v1238 = vsel %vm1150, 0, %v1236
        %v1239 = vcosq.f32.pop %v1237
        %v1240 = vsinq.f32.pop %v1237
        %vm1241 = vweird.f32 %v834
        %v1242 = vand.u32 %v1238, 3
        %vm1243 = vcmp.lt.s32.totalorder %v1242, 2
        %vm1244 = vcmp.eq.s32.totalorder %v1242, 0
        %v1245 = vxor.u32 %v1240, 2147483648
        %v1246 = vsel %vm1244, %v1239, %v1245
        %vm1247 = vcmp.eq.s32.totalorder %v1242, 2
        %v1248 = vxor.u32 %v1239, 2147483648
        %v1249 = vsel %vm1247, %v1248, %v1240
        %v1250 = vsel %vm1243, %v1246, %v1249
        %v1251 = vsel %vm1241, nan, %v1250
        %v1254 = vrot.slane %v1148, 4
        %v1255 = vrot.slane %v1251, 4
        %1258 = vst [vmem:[%s1043] sm:$0xf0] %v1254
        %1259 = vst [vmem:[%s1043 + $0x8] sm:$0xf0] %v1255
        %v1260 = vlaneseq
        %v1261 = vshrl.u32 %v1260, 7
        %v1262 = vsub.s32 2, %v1261
        %v1263 = vrot.slane %v363, %v1262
        %v1264 = vlaneseq
        %v1265 = vshrl.u32 %v1264, 7
        %v1266 = vsub.s32 6, %v1265
        %v1267 = vrot.slane %v363, %v1266
        %v1270 = vlaneseq
        %v1271 = vshrl.u32 %v1270, 7
        %v1272 = vsub.s32 2, %v1271
        %v1273 = vrot.slane %v1263, %v1272
        %v1274 = vlaneseq
        %v1275 = vshrl.u32 %v1274, 7
        %v1276 = vsub.s32 2, %v1275
        %v1277 = vrot.slane %v1267, %v1276
        %v1278 = vmul.f32 %v1273, %v387
        %v1279 = vmul.f32 %v1277, %v387
        %v1280 = vand.u32 2147483647, %v1278
        %vm1281 = vcmp.le.f32.partialorder %v1280, 0.7853982
        %vm1282 = vcmp.lt.s32.totalorder %v1278, 0
        %v1283 = vand.u32 %v1278, 2139095040
        %v1284 = vshrl.u32 %v1283, 23
        %v1285 = vsub.s32 %v1284, 127
        %v1286 = vand.u32 2147483647, %v1278
        %v1287 = vand.u32 %v1286, 8388607
        %v1288 = vor.u32 %v1287, 8388608
        %v1289 = vsub.s32 0, %v1288
        %v1290 = vadd.s32 %v1285, 1
        %vm1291 = vcmp.gt.s32.totalorder %v1290, 0
        %v1292 = vsel %vm1291, %v1290, 0
        %v1293 = vshrl.u32 %v1292, 5
        %v1294 = vand.u32 %v1292, 31
        %v1295 = vsub.s32 32, %v1294
        %v1296 = vshrl.u32 683565275, %v1295
        %v1297 = vshll.u32 683565275, %v1294
        %v1298 = vshrl.u32 2475754826, %v1295
        %v1299 = vor.u32 %v1297, %v1298
        %v1300 = vshll.u32 2475754826, %v1294
        %v1301 = vshrl.u32 2131351028, %v1295
        %v1302 = vor.u32 %v1300, %v1301
        %v1303 = vshll.u32 2131351028, %v1294
        %v1304 = vshrl.u32 2102212464, %v1295
        %v1305 = vor.u32 %v1303, %v1304
        %v1306 = vshll.u32 2102212464, %v1294
        %v1307 = vshrl.u32 920167782, %v1295
        %v1308 = vor.u32 %v1306, %v1307
        %v1309 = vshll.u32 920167782, %v1294
        %v1310 = vshrl.u32 1326507024, %v1295
        %v1311 = vor.u32 %v1309, %v1310
        %vm1312 = vcmp.lt.s32.totalorder %v1293, 1
        %vm1313 = vcmp.lt.s32.totalorder %v1293, 2
        %vm1314 = vcmp.lt.s32.totalorder %v1293, 3
        %vm1315 = vcmp.lt.s32.totalorder %v1293, 4
        %v1316 = vsel %vm1312, %v1296, %v1299
        %v1317 = vsel %vm1315, %v1305, 2102212464
        %v1318 = vsel %vm1314, %v1302, %v1317
        %v1319 = vsel %vm1313, %v1316, %v1318
        %v1320 = vsel %vm1312, %v1299, %v1302
        %v1321 = vsel %vm1315, %v1308, 920167782
        %v1322 = vsel %vm1314, %v1305, %v1321
        %v1323 = vsel %vm1313, %v1320, %v1322
        %v1324 = vsel %vm1312, %v1302, %v1305
        %v1325 = vsel %vm1315, %v1311, 1326507024
        %v1326 = vsel %vm1314, %v1308, %v1325
        %v1327 = vsel %vm1313, %v1324, %v1326
        %v1328 = vshll.u32 %v1288, 8
        %v1329 = vmul.u32.u64.compose %v1328, %v1327
        %v1330 = vextract.low.u32 %v1329
        %v1331 = vextract.high.u32 %v1329
        %v1332 = vmul.u32.u64.compose %v1328, %v1323
        %v1333 = vextract.low.u32 %v1332
        %v1334 = vextract.high.u32 %v1332
        %v1335 = vmul.u32 %v1328, %v1319
        %v1336 = vadd.s32 %v1331, %v1333
        %vm1337 = vc.u32 %v1331, %v1333
        %v1338 = vadd.s32 %v1334, 1
        %v1339 = vsel %vm1337, %v1338, %v1334
        %v1340 = vadd.s32 %v1335, %v1339
        %v1341 = vadd.s32 %v1340, 536870912
        %v1342 = vshrl.u32 %v1341, 30
        %v1343 = vshll.u32 %v1342, 30
        %v1344 = vsub.s32 %v1340, %v1343
        %vm1345 = vcmp.lt.s32.totalorder %v1344, 0
        %v1346 = vsub.s32 0, %v1344
        %v1347 = vsel %vm1345, %v1346, %v1344
        %v1348 = vclz %v1347
        %v1349 = vsub.s32 %v1348, 2
        %vm1350 = vcmp.gt.s32.totalorder 0, %v1349
        %v1351 = vsel %vm1350, 0, %v1349
        %v1352 = vsub.s32 32, %v1351
        %v1353 = vshll.u32 %v1344, %v1351
        %v1354 = vshrl.u32 %v1336, %v1352
        %v1355 = vor.u32 %v1353, %v1354
        %v1356 = vsub.s32 4294967266, %v1351
        %v1357 = vadd.s32 %v1356, 127
        %v1358 = vshll.u32 %v1357, 23
        %v1359 = vor.u32 4788187, %v1358
        %v1360 = vand.u32 2147483647, %v1359
        %v1362 = vcvt.s32.f32 %v1355
        %v1363 = vmul.f32 %v1362, %v1360
        %v1364 = vxor.u32 %v1363, 2147483648
        %v1365 = vsel %vm1282, %v1364, %v1363
        %v1366 = vsub.s32 4, %v1342
        %v1367 = vsel %vm1282, %v1366, %v1342
        %v1368 = vsel %vm1281, %v1278, %v1365
        %v1369 = vsel %vm1281, 0, %v1367
        %v1370 = vcosq.f32.pop %v1368
        %v1371 = vsinq.f32.pop %v1368
        %vm1372 = vweird.f32 %v1278
        %v1373 = vadd.s32 %v1369, 3
        %v1374 = vand.u32 %v1373, 3
        %vm1375 = vcmp.lt.s32.totalorder %v1374, 2
        %vm1376 = vcmp.eq.s32.totalorder %v1374, 0
        %v1377 = vxor.u32 %v1371, 2147483648
        %v1378 = vsel %vm1376, %v1370, %v1377
        %vm1379 = vcmp.eq.s32.totalorder %v1374, 2
        %v1380 = vxor.u32 %v1370, 2147483648
        %v1381 = vsel %vm1379, %v1380, %v1371
        %v1382 = vsel %vm1375, %v1378, %v1381
        %v1383 = vsel %vm1372, nan, %v1382
        %v1384 = vand.u32 2147483647, %v1279
        %vm1385 = vcmp.le.f32.partialorder %v1384, 0.7853982
        %vm1386 = vcmp.lt.s32.totalorder %v1279, 0
        %v1387 = vand.u32 %v1279, 2139095040
        %v1388 = vshrl.u32 %v1387, 23
        %v1389 = vsub.s32 %v1388, 127
        %v1390 = vand.u32 2147483647, %v1279
        %v1391 = vand.u32 %v1390, 8388607
        %v1392 = vor.u32 %v1391, 8388608
        %v1393 = vsub.s32 0, %v1392
        %v1394 = vadd.s32 %v1389, 1
        %vm1395 = vcmp.gt.s32.totalorder %v1394, 0
        %v1396 = vsel %vm1395, %v1394, 0
        %v1397 = vshrl.u32 %v1396, 5
        %v1398 = vand.u32 %v1396, 31
        %v1399 = vsub.s32 32, %v1398
        %v1400 = vshrl.u32 683565275, %v1399
        %v1401 = vshll.u32 683565275, %v1398
        %v1402 = vshrl.u32 2475754826, %v1399
        %v1403 = vor.u32 %v1401, %v1402
        %v1404 = vshll.u32 2475754826, %v1398
        %v1405 = vshrl.u32 2131351028, %v1399
        %v1406 = vor.u32 %v1404, %v1405
        %v1407 = vshll.u32 2131351028, %v1398
        %v1408 = vshrl.u32 2102212464, %v1399
        %v1409 = vor.u32 %v1407, %v1408
        %v1410 = vshll.u32 2102212464, %v1398
        %v1411 = vshrl.u32 920167782, %v1399
        %v1412 = vor.u32 %v1410, %v1411
        %v1413 = vshll.u32 920167782, %v1398
        %v1414 = vshrl.u32 1326507024, %v1399
        %v1415 = vor.u32 %v1413, %v1414
        %vm1416 = vcmp.lt.s32.totalorder %v1397, 1
        %vm1417 = vcmp.lt.s32.totalorder %v1397, 2
        %vm1418 = vcmp.lt.s32.totalorder %v1397, 3
        %vm1419 = vcmp.lt.s32.totalorder %v1397, 4
        %v1420 = vsel %vm1416, %v1400, %v1403
        %v1421 = vsel %vm1419, %v1409, 2102212464
        %v1422 = vsel %vm1418, %v1406, %v1421
        %v1423 = vsel %vm1417, %v1420, %v1422
        %v1424 = vsel %vm1416, %v1403, %v1406
        %v1425 = vsel %vm1419, %v1412, 920167782
        %v1426 = vsel %vm1418, %v1409, %v1425
        %v1427 = vsel %vm1417, %v1424, %v1426
        %v1428 = vsel %vm1416, %v1406, %v1409
        %v1429 = vsel %vm1419, %v1415, 1326507024
        %v1430 = vsel %vm1418, %v1412, %v1429
        %v1431 = vsel %vm1417, %v1428, %v1430
        %v1432 = vshll.u32 %v1392, 8
        %v1433 = vmul.u32.u64.compose %v1432, %v1431
        %v1434 = vextract.low.u32 %v1433
        %v1435 = vextract.high.u32 %v1433
        %v1436 = vmul.u32.u64.compose %v1432, %v1427
        %v1437 = vextract.low.u32 %v1436
        %v1438 = vextract.high.u32 %v1436
        %v1439 = vmul.u32 %v1432, %v1423
        %v1440 = vadd.s32 %v1435, %v1437
        %vm1441 = vc.u32 %v1435, %v1437
        %v1442 = vadd.s32 %v1438, 1
        %v1443 = vsel %vm1441, %v1442, %v1438
        %v1444 = vadd.s32 %v1439, %v1443
        %v1445 = vadd.s32 %v1444, 536870912
        %v1446 = vshrl.u32 %v1445, 30
        %v1447 = vshll.u32 %v1446, 30
        %v1448 = vsub.s32 %v1444, %v1447
        %vm1449 = vcmp.lt.s32.totalorder %v1448, 0
        %v1450 = vsub.s32 0, %v1448
        %v1451 = vsel %vm1449, %v1450, %v1448
        %v1452 = vclz %v1451
        %v1453 = vsub.s32 %v1452, 2
        %vm1454 = vcmp.gt.s32.totalorder 0, %v1453
        %v1455 = vsel %vm1454, 0, %v1453
        %v1456 = vsub.s32 32, %v1455
        %v1457 = vshll.u32 %v1448, %v1455
        %v1458 = vshrl.u32 %v1440, %v1456
        %v1459 = vor.u32 %v1457, %v1458
        %v1460 = vsub.s32 4294967266, %v1455
        %v1461 = vadd.s32 %v1460, 127
        %v1462 = vshll.u32 %v1461, 23
        %v1463 = vor.u32 4788187, %v1462
        %v1464 = vand.u32 2147483647, %v1463
        %v1466 = vcvt.s32.f32 %v1459
        %v1467 = vmul.f32 %v1466, %v1464
        %v1468 = vxor.u32 %v1467, 2147483648
        %v1469 = vsel %vm1386, %v1468, %v1467
        %v1470 = vsub.s32 4, %v1446
        %v1471 = vsel %vm1386, %v1470, %v1446
        %v1472 = vsel %vm1385, %v1279, %v1469
        %v1473 = vsel %vm1385, 0, %v1471
        %v1474 = vcosq.f32.pop %v1472
        %v1475 = vsinq.f32.pop %v1472
        %vm1476 = vweird.f32 %v1279
        %v1477 = vadd.s32 %v1473, 3
        %v1478 = vand.u32 %v1477, 3
        %vm1479 = vcmp.lt.s32.totalorder %v1478, 2
        %vm1480 = vcmp.eq.s32.totalorder %v1478, 0
        %v1481 = vxor.u32 %v1475, 2147483648
        %v1482 = vsel %vm1480, %v1474, %v1481
        %vm1483 = vcmp.eq.s32.totalorder %v1478, 2
        %v1484 = vxor.u32 %v1474, 2147483648
        %v1485 = vsel %vm1483, %v1484, %v1475
        %v1486 = vsel %vm1479, %v1482, %v1485
        %v1487 = vsel %vm1476, nan, %v1486
        %s1488 = scalar_lea.vmem %s173, 32 [#allocation6]
        %1489 = vst [vmem:[%s1488] sm:$0xf] %v1383
        %1490 = vst [vmem:[%s1488 + $0x8] sm:$0xf] %v1487
        %v1491 = vand.u32 2147483647, %v1278
        %vm1492 = vcmp.le.f32.partialorder %v1491, 0.7853982
        %vm1493 = vcmp.lt.s32.totalorder %v1278, 0
        %v1494 = vand.u32 %v1278, 2139095040
        %v1495 = vshrl.u32 %v1494, 23
        %v1496 = vsub.s32 %v1495, 127
        %v1497 = vand.u32 2147483647, %v1278
        %v1498 = vand.u32 %v1497, 8388607
        %v1499 = vor.u32 %v1498, 8388608
        %v1500 = vsub.s32 0, %v1499
        %v1501 = vadd.s32 %v1496, 1
        %vm1502 = vcmp.gt.s32.totalorder %v1501, 0
        %v1503 = vsel %vm1502, %v1501, 0
        %v1504 = vshrl.u32 %v1503, 5
        %v1505 = vand.u32 %v1503, 31
        %v1506 = vsub.s32 32, %v1505
        %v1507 = vshrl.u32 683565275, %v1506
        %v1508 = vshll.u32 683565275, %v1505
        %v1509 = vshrl.u32 2475754826, %v1506
        %v1510 = vor.u32 %v1508, %v1509
        %v1511 = vshll.u32 2475754826, %v1505
        %v1512 = vshrl.u32 2131351028, %v1506
        %v1513 = vor.u32 %v1511, %v1512
        %v1514 = vshll.u32 2131351028, %v1505
        %v1515 = vshrl.u32 2102212464, %v1506
        %v1516 = vor.u32 %v1514, %v1515
        %v1517 = vshll.u32 2102212464, %v1505
        %v1518 = vshrl.u32 920167782, %v1506
        %v1519 = vor.u32 %v1517, %v1518
        %v1520 = vshll.u32 920167782, %v1505
        %v1521 = vshrl.u32 1326507024, %v1506
        %v1522 = vor.u32 %v1520, %v1521
        %vm1523 = vcmp.lt.s32.totalorder %v1504, 1
        %vm1524 = vcmp.lt.s32.totalorder %v1504, 2
        %vm1525 = vcmp.lt.s32.totalorder %v1504, 3
        %vm1526 = vcmp.lt.s32.totalorder %v1504, 4
        %v1527 = vsel %vm1523, %v1507, %v1510
        %v1528 = vsel %vm1526, %v1516, 2102212464
        %v1529 = vsel %vm1525, %v1513, %v1528
        %v1530 = vsel %vm1524, %v1527, %v1529
        %v1531 = vsel %vm1523, %v1510, %v1513
        %v1532 = vsel %vm1526, %v1519, 920167782
        %v1533 = vsel %vm1525, %v1516, %v1532
        %v1534 = vsel %vm1524, %v1531, %v1533
        %v1535 = vsel %vm1523, %v1513, %v1516
        %v1536 = vsel %vm1526, %v1522, 1326507024
        %v1537 = vsel %vm1525, %v1519, %v1536
        %v1538 = vsel %vm1524, %v1535, %v1537
        %v1539 = vshll.u32 %v1499, 8
        %v1540 = vmul.u32.u64.compose %v1539, %v1538
        %v1541 = vextract.low.u32 %v1540
        %v1542 = vextract.high.u32 %v1540
        %v1543 = vmul.u32.u64.compose %v1539, %v1534
        %v1544 = vextract.low.u32 %v1543
        %v1545 = vextract.high.u32 %v1543
        %v1546 = vmul.u32 %v1539, %v1530
        %v1547 = vadd.s32 %v1542, %v1544
        %vm1548 = vc.u32 %v1542, %v1544
        %v1549 = vadd.s32 %v1545, 1
        %v1550 = vsel %vm1548, %v1549, %v1545
        %v1551 = vadd.s32 %v1546, %v1550
        %v1552 = vadd.s32 %v1551, 536870912
        %v1553 = vshrl.u32 %v1552, 30
        %v1554 = vshll.u32 %v1553, 30
        %v1555 = vsub.s32 %v1551, %v1554
        %vm1556 = vcmp.lt.s32.totalorder %v1555, 0
        %v1557 = vsub.s32 0, %v1555
        %v1558 = vsel %vm1556, %v1557, %v1555
        %v1559 = vclz %v1558
        %v1560 = vsub.s32 %v1559, 2
        %vm1561 = vcmp.gt.s32.totalorder 0, %v1560
        %v1562 = vsel %vm1561, 0, %v1560
        %v1563 = vsub.s32 32, %v1562
        %v1564 = vshll.u32 %v1555, %v1562
        %v1565 = vshrl.u32 %v1547, %v1563
        %v1566 = vor.u32 %v1564, %v1565
        %v1567 = vsub.s32 4294967266, %v1562
        %v1568 = vadd.s32 %v1567, 127
        %v1569 = vshll.u32 %v1568, 23
        %v1570 = vor.u32 4788187, %v1569
        %v1571 = vand.u32 2147483647, %v1570
        %v1573 = vcvt.s32.f32 %v1566
        %v1574 = vmul.f32 %v1573, %v1571
        %v1575 = vxor.u32 %v1574, 2147483648
        %v1576 = vsel %vm1493, %v1575, %v1574
        %v1577 = vsub.s32 4, %v1553
        %v1578 = vsel %vm1493, %v1577, %v1553
        %v1579 = vsel %vm1492, %v1278, %v1576
        %v1580 = vsel %vm1492, 0, %v1578
        %v1581 = vcosq.f32.pop %v1579
        %v1582 = vsinq.f32.pop %v1579
        %vm1583 = vweird.f32 %v1278
        %v1584 = vand.u32 %v1580, 3
        %vm1585 = vcmp.lt.s32.totalorder %v1584, 2
        %vm1586 = vcmp.eq.s32.totalorder %v1584, 0
        %v1587 = vxor.u32 %v1582, 2147483648
        %v1588 = vsel %vm1586, %v1581, %v1587
        %vm1589 = vcmp.eq.s32.totalorder %v1584, 2
        %v1590 = vxor.u32 %v1581, 2147483648
        %v1591 = vsel %vm1589, %v1590, %v1582
        %v1592 = vsel %vm1585, %v1588, %v1591
        %v1593 = vsel %vm1583, nan, %v1592
        %v1594 = vand.u32 2147483647, %v1279
        %vm1595 = vcmp.le.f32.partialorder %v1594, 0.7853982
        %vm1596 = vcmp.lt.s32.totalorder %v1279, 0
        %v1597 = vand.u32 %v1279, 2139095040
        %v1598 = vshrl.u32 %v1597, 23
        %v1599 = vsub.s32 %v1598, 127
        %v1600 = vand.u32 2147483647, %v1279
        %v1601 = vand.u32 %v1600, 8388607
        %v1602 = vor.u32 %v1601, 8388608
        %v1603 = vsub.s32 0, %v1602
        %v1604 = vadd.s32 %v1599, 1
        %vm1605 = vcmp.gt.s32.totalorder %v1604, 0
        %v1606 = vsel %vm1605, %v1604, 0
        %v1607 = vshrl.u32 %v1606, 5
        %v1608 = vand.u32 %v1606, 31
        %v1609 = vsub.s32 32, %v1608
        %v1610 = vshrl.u32 683565275, %v1609
        %v1611 = vshll.u32 683565275, %v1608
        %v1612 = vshrl.u32 2475754826, %v1609
        %v1613 = vor.u32 %v1611, %v1612
        %v1614 = vshll.u32 2475754826, %v1608
        %v1615 = vshrl.u32 2131351028, %v1609
        %v1616 = vor.u32 %v1614, %v1615
        %v1617 = vshll.u32 2131351028, %v1608
        %v1618 = vshrl.u32 2102212464, %v1609
        %v1619 = vor.u32 %v1617, %v1618
        %v1620 = vshll.u32 2102212464, %v1608
        %v1621 = vshrl.u32 920167782, %v1609
        %v1622 = vor.u32 %v1620, %v1621
        %v1623 = vshll.u32 920167782, %v1608
        %v1624 = vshrl.u32 1326507024, %v1609
        %v1625 = vor.u32 %v1623, %v1624
        %vm1626 = vcmp.lt.s32.totalorder %v1607, 1
        %vm1627 = vcmp.lt.s32.totalorder %v1607, 2
        %vm1628 = vcmp.lt.s32.totalorder %v1607, 3
        %vm1629 = vcmp.lt.s32.totalorder %v1607, 4
        %v1630 = vsel %vm1626, %v1610, %v1613
        %v1631 = vsel %vm1629, %v1619, 2102212464
        %v1632 = vsel %vm1628, %v1616, %v1631
        %v1633 = vsel %vm1627, %v1630, %v1632
        %v1634 = vsel %vm1626, %v1613, %v1616
        %v1635 = vsel %vm1629, %v1622, 920167782
        %v1636 = vsel %vm1628, %v1619, %v1635
        %v1637 = vsel %vm1627, %v1634, %v1636
        %v1638 = vsel %vm1626, %v1616, %v1619
        %v1639 = vsel %vm1629, %v1625, 1326507024
        %v1640 = vsel %vm1628, %v1622, %v1639
        %v1641 = vsel %vm1627, %v1638, %v1640
        %v1642 = vshll.u32 %v1602, 8
        %v1643 = vmul.u32.u64.compose %v1642, %v1641
        %v1644 = vextract.low.u32 %v1643
        %v1645 = vextract.high.u32 %v1643
        %v1646 = vmul.u32.u64.compose %v1642, %v1637
        %v1647 = vextract.low.u32 %v1646
        %v1648 = vextract.high.u32 %v1646
        %v1649 = vmul.u32 %v1642, %v1633
        %v1650 = vadd.s32 %v1645, %v1647
        %vm1651 = vc.u32 %v1645, %v1647
        %v1652 = vadd.s32 %v1648, 1
        %v1653 = vsel %vm1651, %v1652, %v1648
        %v1654 = vadd.s32 %v1649, %v1653
        %v1655 = vadd.s32 %v1654, 536870912
        %v1656 = vshrl.u32 %v1655, 30
        %v1657 = vshll.u32 %v1656, 30
        %v1658 = vsub.s32 %v1654, %v1657
        %vm1659 = vcmp.lt.s32.totalorder %v1658, 0
        %v1660 = vsub.s32 0, %v1658
        %v1661 = vsel %vm1659, %v1660, %v1658
        %v1662 = vclz %v1661
        %v1663 = vsub.s32 %v1662, 2
        %vm1664 = vcmp.gt.s32.totalorder 0, %v1663
        %v1665 = vsel %vm1664, 0, %v1663
        %v1666 = vsub.s32 32, %v1665
        %v1667 = vshll.u32 %v1658, %v1665
        %v1668 = vshrl.u32 %v1650, %v1666
        %v1669 = vor.u32 %v1667, %v1668
        %v1670 = vsub.s32 4294967266, %v1665
        %v1671 = vadd.s32 %v1670, 127
        %v1672 = vshll.u32 %v1671, 23
        %v1673 = vor.u32 4788187, %v1672
        %v1674 = vand.u32 2147483647, %v1673
        %v1676 = vcvt.s32.f32 %v1669
        %v1677 = vmul.f32 %v1676, %v1674
        %v1678 = vxor.u32 %v1677, 2147483648
        %v1679 = vsel %vm1596, %v1678, %v1677
        %v1680 = vsub.s32 4, %v1656
        %v1681 = vsel %vm1596, %v1680, %v1656
        %v1682 = vsel %vm1595, %v1279, %v1679
        %v1683 = vsel %vm1595, 0, %v1681
        %v1684 = vcosq.f32.pop %v1682
        %v1685 = vsinq.f32.pop %v1682
        %vm1686 = vweird.f32 %v1279
        %v1687 = vand.u32 %v1683, 3
        %vm1688 = vcmp.lt.s32.totalorder %v1687, 2
        %vm1689 = vcmp.eq.s32.totalorder %v1687, 0
        %v1690 = vxor.u32 %v1685, 2147483648
        %v1691 = vsel %vm1689, %v1684, %v1690
        %vm1692 = vcmp.eq.s32.totalorder %v1687, 2
        %v1693 = vxor.u32 %v1684, 2147483648
        %v1694 = vsel %vm1692, %v1693, %v1685
        %v1695 = vsel %vm1688, %v1691, %v1694
        %v1696 = vsel %vm1686, nan, %v1695
        %v1699 = vrot.slane %v1593, 4
        %v1700 = vrot.slane %v1696, 4
        %1703 = vst [vmem:[%s1488] sm:$0xf0] %v1699
        %1704 = vst [vmem:[%s1488 + $0x8] sm:$0xf0] %v1700
        %v1705 = vlaneseq
        %v1706 = vshrl.u32 %v1705, 7
        %v1707 = vsub.s32 3, %v1706
        %v1708 = vrot.slane %v363, %v1707
        %v1709 = vlaneseq
        %v1710 = vshrl.u32 %v1709, 7
        %v1711 = vsub.s32 7, %v1710
        %v1712 = vrot.slane %v363, %v1711
        %v1715 = vlaneseq
        %v1716 = vshrl.u32 %v1715, 7
        %v1717 = vsub.s32 3, %v1716
        %v1718 = vrot.slane %v1708, %v1717
        %v1719 = vlaneseq
        %v1720 = vshrl.u32 %v1719, 7
        %v1721 = vsub.s32 3, %v1720
        %v1722 = vrot.slane %v1712, %v1721
        %v1723 = vmul.f32 %v1718, %v387
        %v1724 = vmul.f32 %v1722, %v387
        %v1725 = vand.u32 2147483647, %v1723
        %vm1726 = vcmp.le.f32.partialorder %v1725, 0.7853982
        %vm1727 = vcmp.lt.s32.totalorder %v1723, 0
        %v1728 = vand.u32 %v1723, 2139095040
        %v1729 = vshrl.u32 %v1728, 23
        %v1730 = vsub.s32 %v1729, 127
        %v1731 = vand.u32 2147483647, %v1723
        %v1732 = vand.u32 %v1731, 8388607
        %v1733 = vor.u32 %v1732, 8388608
        %v1734 = vsub.s32 0, %v1733
        %v1735 = vadd.s32 %v1730, 1
        %vm1736 = vcmp.gt.s32.totalorder %v1735, 0
        %v1737 = vsel %vm1736, %v1735, 0
        %v1738 = vshrl.u32 %v1737, 5
        %v1739 = vand.u32 %v1737, 31
        %v1740 = vsub.s32 32, %v1739
        %v1741 = vshrl.u32 683565275, %v1740
        %v1742 = vshll.u32 683565275, %v1739
        %v1743 = vshrl.u32 2475754826, %v1740
        %v1744 = vor.u32 %v1742, %v1743
        %v1745 = vshll.u32 2475754826, %v1739
        %v1746 = vshrl.u32 2131351028, %v1740
        %v1747 = vor.u32 %v1745, %v1746
        %v1748 = vshll.u32 2131351028, %v1739
        %v1749 = vshrl.u32 2102212464, %v1740
        %v1750 = vor.u32 %v1748, %v1749
        %v1751 = vshll.u32 2102212464, %v1739
        %v1752 = vshrl.u32 920167782, %v1740
        %v1753 = vor.u32 %v1751, %v1752
        %v1754 = vshll.u32 920167782, %v1739
        %v1755 = vshrl.u32 1326507024, %v1740
        %v1756 = vor.u32 %v1754, %v1755
        %vm1757 = vcmp.lt.s32.totalorder %v1738, 1
        %vm1758 = vcmp.lt.s32.totalorder %v1738, 2
        %vm1759 = vcmp.lt.s32.totalorder %v1738, 3
        %vm1760 = vcmp.lt.s32.totalorder %v1738, 4
        %v1761 = vsel %vm1757, %v1741, %v1744
        %v1762 = vsel %vm1760, %v1750, 2102212464
        %v1763 = vsel %vm1759, %v1747, %v1762
        %v1764 = vsel %vm1758, %v1761, %v1763
        %v1765 = vsel %vm1757, %v1744, %v1747
        %v1766 = vsel %vm1760, %v1753, 920167782
        %v1767 = vsel %vm1759, %v1750, %v1766
        %v1768 = vsel %vm1758, %v1765, %v1767
        %v1769 = vsel %vm1757, %v1747, %v1750
        %v1770 = vsel %vm1760, %v1756, 1326507024
        %v1771 = vsel %vm1759, %v1753, %v1770
        %v1772 = vsel %vm1758, %v1769, %v1771
        %v1773 = vshll.u32 %v1733, 8
        %v1774 = vmul.u32.u64.compose %v1773, %v1772
        %v1775 = vextract.low.u32 %v1774
        %v1776 = vextract.high.u32 %v1774
        %v1777 = vmul.u32.u64.compose %v1773, %v1768
        %v1778 = vextract.low.u32 %v1777
        %v1779 = vextract.high.u32 %v1777
        %v1780 = vmul.u32 %v1773, %v1764
        %v1781 = vadd.s32 %v1776, %v1778
        %vm1782 = vc.u32 %v1776, %v1778
        %v1783 = vadd.s32 %v1779, 1
        %v1784 = vsel %vm1782, %v1783, %v1779
        %v1785 = vadd.s32 %v1780, %v1784
        %v1786 = vadd.s32 %v1785, 536870912
        %v1787 = vshrl.u32 %v1786, 30
        %v1788 = vshll.u32 %v1787, 30
        %v1789 = vsub.s32 %v1785, %v1788
        %vm1790 = vcmp.lt.s32.totalorder %v1789, 0
        %v1791 = vsub.s32 0, %v1789
        %v1792 = vsel %vm1790, %v1791, %v1789
        %v1793 = vclz %v1792
        %v1794 = vsub.s32 %v1793, 2
        %vm1795 = vcmp.gt.s32.totalorder 0, %v1794
        %v1796 = vsel %vm1795, 0, %v1794
        %v1797 = vsub.s32 32, %v1796
        %v1798 = vshll.u32 %v1789, %v1796
        %v1799 = vshrl.u32 %v1781, %v1797
        %v1800 = vor.u32 %v1798, %v1799
        %v1801 = vsub.s32 4294967266, %v1796
        %v1802 = vadd.s32 %v1801, 127
        %v1803 = vshll.u32 %v1802, 23
        %v1804 = vor.u32 4788187, %v1803
        %v1805 = vand.u32 2147483647, %v1804
        %v1807 = vcvt.s32.f32 %v1800
        %v1808 = vmul.f32 %v1807, %v1805
        %v1809 = vxor.u32 %v1808, 2147483648
        %v1810 = vsel %vm1727, %v1809, %v1808
        %v1811 = vsub.s32 4, %v1787
        %v1812 = vsel %vm1727, %v1811, %v1787
        %v1813 = vsel %vm1726, %v1723, %v1810
        %v1814 = vsel %vm1726, 0, %v1812
        %v1815 = vcosq.f32.pop %v1813
        %v1816 = vsinq.f32.pop %v1813
        %vm1817 = vweird.f32 %v1723
        %v1818 = vadd.s32 %v1814, 3
        %v1819 = vand.u32 %v1818, 3
        %vm1820 = vcmp.lt.s32.totalorder %v1819, 2
        %vm1821 = vcmp.eq.s32.totalorder %v1819, 0
        %v1822 = vxor.u32 %v1816, 2147483648
        %v1823 = vsel %vm1821, %v1815, %v1822
        %vm1824 = vcmp.eq.s32.totalorder %v1819, 2
        %v1825 = vxor.u32 %v1815, 2147483648
        %v1826 = vsel %vm1824, %v1825, %v1816
        %v1827 = vsel %vm1820, %v1823, %v1826
        %v1828 = vsel %vm1817, nan, %v1827
        %v1829 = vand.u32 2147483647, %v1724
        %vm1830 = vcmp.le.f32.partialorder %v1829, 0.7853982
        %vm1831 = vcmp.lt.s32.totalorder %v1724, 0
        %v1832 = vand.u32 %v1724, 2139095040
        %v1833 = vshrl.u32 %v1832, 23
        %v1834 = vsub.s32 %v1833, 127
        %v1835 = vand.u32 2147483647, %v1724
        %v1836 = vand.u32 %v1835, 8388607
        %v1837 = vor.u32 %v1836, 8388608
        %v1838 = vsub.s32 0, %v1837
        %v1839 = vadd.s32 %v1834, 1
        %vm1840 = vcmp.gt.s32.totalorder %v1839, 0
        %v1841 = vsel %vm1840, %v1839, 0
        %v1842 = vshrl.u32 %v1841, 5
        %v1843 = vand.u32 %v1841, 31
        %v1844 = vsub.s32 32, %v1843
        %v1845 = vshrl.u32 683565275, %v1844
        %v1846 = vshll.u32 683565275, %v1843
        %v1847 = vshrl.u32 2475754826, %v1844
        %v1848 = vor.u32 %v1846, %v1847
        %v1849 = vshll.u32 2475754826, %v1843
        %v1850 = vshrl.u32 2131351028, %v1844
        %v1851 = vor.u32 %v1849, %v1850
        %v1852 = vshll.u32 2131351028, %v1843
        %v1853 = vshrl.u32 2102212464, %v1844
        %v1854 = vor.u32 %v1852, %v1853
        %v1855 = vshll.u32 2102212464, %v1843
        %v1856 = vshrl.u32 920167782, %v1844
        %v1857 = vor.u32 %v1855, %v1856
        %v1858 = vshll.u32 920167782, %v1843
        %v1859 = vshrl.u32 1326507024, %v1844
        %v1860 = vor.u32 %v1858, %v1859
        %vm1861 = vcmp.lt.s32.totalorder %v1842, 1
        %vm1862 = vcmp.lt.s32.totalorder %v1842, 2
        %vm1863 = vcmp.lt.s32.totalorder %v1842, 3
        %vm1864 = vcmp.lt.s32.totalorder %v1842, 4
        %v1865 = vsel %vm1861, %v1845, %v1848
        %v1866 = vsel %vm1864, %v1854, 2102212464
        %v1867 = vsel %vm1863, %v1851, %v1866
        %v1868 = vsel %vm1862, %v1865, %v1867
        %v1869 = vsel %vm1861, %v1848, %v1851
        %v1870 = vsel %vm1864, %v1857, 920167782
        %v1871 = vsel %vm1863, %v1854, %v1870
        %v1872 = vsel %vm1862, %v1869, %v1871
        %v1873 = vsel %vm1861, %v1851, %v1854
        %v1874 = vsel %vm1864, %v1860, 1326507024
        %v1875 = vsel %vm1863, %v1857, %v1874
        %v1876 = vsel %vm1862, %v1873, %v1875
        %v1877 = vshll.u32 %v1837, 8
        %v1878 = vmul.u32.u64.compose %v1877, %v1876
        %v1879 = vextract.low.u32 %v1878
        %v1880 = vextract.high.u32 %v1878
        %v1881 = vmul.u32.u64.compose %v1877, %v1872
        %v1882 = vextract.low.u32 %v1881
        %v1883 = vextract.high.u32 %v1881
        %v1884 = vmul.u32 %v1877, %v1868
        %v1885 = vadd.s32 %v1880, %v1882
        %vm1886 = vc.u32 %v1880, %v1882
        %v1887 = vadd.s32 %v1883, 1
        %v1888 = vsel %vm1886, %v1887, %v1883
        %v1889 = vadd.s32 %v1884, %v1888
        %v1890 = vadd.s32 %v1889, 536870912
        %v1891 = vshrl.u32 %v1890, 30
        %v1892 = vshll.u32 %v1891, 30
        %v1893 = vsub.s32 %v1889, %v1892
        %vm1894 = vcmp.lt.s32.totalorder %v1893, 0
        %v1895 = vsub.s32 0, %v1893
        %v1896 = vsel %vm1894, %v1895, %v1893
        %v1897 = vclz %v1896
        %v1898 = vsub.s32 %v1897, 2
        %vm1899 = vcmp.gt.s32.totalorder 0, %v1898
        %v1900 = vsel %vm1899, 0, %v1898
        %v1901 = vsub.s32 32, %v1900
        %v1902 = vshll.u32 %v1893, %v1900
        %v1903 = vshrl.u32 %v1885, %v1901
        %v1904 = vor.u32 %v1902, %v1903
        %v1905 = vsub.s32 4294967266, %v1900
        %v1906 = vadd.s32 %v1905, 127
        %v1907 = vshll.u32 %v1906, 23
        %v1908 = vor.u32 4788187, %v1907
        %v1909 = vand.u32 2147483647, %v1908
        %v1911 = vcvt.s32.f32 %v1904
        %v1912 = vmul.f32 %v1911, %v1909
        %v1913 = vxor.u32 %v1912, 2147483648
        %v1914 = vsel %vm1831, %v1913, %v1912
        %v1915 = vsub.s32 4, %v1891
        %v1916 = vsel %vm1831, %v1915, %v1891
        %v1917 = vsel %vm1830, %v1724, %v1914
        %v1918 = vsel %vm1830, 0, %v1916
        %v1919 = vcosq.f32.pop %v1917
        %v1920 = vsinq.f32.pop %v1917
        %vm1921 = vweird.f32 %v1724
        %v1922 = vadd.s32 %v1918, 3
        %v1923 = vand.u32 %v1922, 3
        %vm1924 = vcmp.lt.s32.totalorder %v1923, 2
        %vm1925 = vcmp.eq.s32.totalorder %v1923, 0
        %v1926 = vxor.u32 %v1920, 2147483648
        %v1927 = vsel %vm1925, %v1919, %v1926
        %vm1928 = vcmp.eq.s32.totalorder %v1923, 2
        %v1929 = vxor.u32 %v1919, 2147483648
        %v1930 = vsel %vm1928, %v1929, %v1920
        %v1931 = vsel %vm1924, %v1927, %v1930
        %v1932 = vsel %vm1921, nan, %v1931
        %s1933 = scalar_lea.vmem %s173, 48 [#allocation6]
        %1934 = vst [vmem:[%s1933] sm:$0xf] %v1828
        %1935 = vst [vmem:[%s1933 + $0x8] sm:$0xf] %v1932
        %v1936 = vand.u32 2147483647, %v1723
        %vm1937 = vcmp.le.f32.partialorder %v1936, 0.7853982
        %vm1938 = vcmp.lt.s32.totalorder %v1723, 0
        %v1939 = vand.u32 %v1723, 2139095040
        %v1940 = vshrl.u32 %v1939, 23
        %v1941 = vsub.s32 %v1940, 127
        %v1942 = vand.u32 2147483647, %v1723
        %v1943 = vand.u32 %v1942, 8388607
        %v1944 = vor.u32 %v1943, 8388608
        %v1945 = vsub.s32 0, %v1944
        %v1946 = vadd.s32 %v1941, 1
        %vm1947 = vcmp.gt.s32.totalorder %v1946, 0
        %v1948 = vsel %vm1947, %v1946, 0
        %v1949 = vshrl.u32 %v1948, 5
        %v1950 = vand.u32 %v1948, 31
        %v1951 = vsub.s32 32, %v1950
        %v1952 = vshrl.u32 683565275, %v1951
        %v1953 = vshll.u32 683565275, %v1950
        %v1954 = vshrl.u32 2475754826, %v1951
        %v1955 = vor.u32 %v1953, %v1954
        %v1956 = vshll.u32 2475754826, %v1950
        %v1957 = vshrl.u32 2131351028, %v1951
        %v1958 = vor.u32 %v1956, %v1957
        %v1959 = vshll.u32 2131351028, %v1950
        %v1960 = vshrl.u32 2102212464, %v1951
        %v1961 = vor.u32 %v1959, %v1960
        %v1962 = vshll.u32 2102212464, %v1950
        %v1963 = vshrl.u32 920167782, %v1951
        %v1964 = vor.u32 %v1962, %v1963
        %v1965 = vshll.u32 920167782, %v1950
        %v1966 = vshrl.u32 1326507024, %v1951
        %v1967 = vor.u32 %v1965, %v1966
        %vm1968 = vcmp.lt.s32.totalorder %v1949, 1
        %vm1969 = vcmp.lt.s32.totalorder %v1949, 2
        %vm1970 = vcmp.lt.s32.totalorder %v1949, 3
        %vm1971 = vcmp.lt.s32.totalorder %v1949, 4
        %v1972 = vsel %vm1968, %v1952, %v1955
        %v1973 = vsel %vm1971, %v1961, 2102212464
        %v1974 = vsel %vm1970, %v1958, %v1973
        %v1975 = vsel %vm1969, %v1972, %v1974
        %v1976 = vsel %vm1968, %v1955, %v1958
        %v1977 = vsel %vm1971, %v1964, 920167782
        %v1978 = vsel %vm1970, %v1961, %v1977
        %v1979 = vsel %vm1969, %v1976, %v1978
        %v1980 = vsel %vm1968, %v1958, %v1961
        %v1981 = vsel %vm1971, %v1967, 1326507024
        %v1982 = vsel %vm1970, %v1964, %v1981
        %v1983 = vsel %vm1969, %v1980, %v1982
        %v1984 = vshll.u32 %v1944, 8
        %v1985 = vmul.u32.u64.compose %v1984, %v1983
        %v1986 = vextract.low.u32 %v1985
        %v1987 = vextract.high.u32 %v1985
        %v1988 = vmul.u32.u64.compose %v1984, %v1979
        %v1989 = vextract.low.u32 %v1988
        %v1990 = vextract.high.u32 %v1988
        %v1991 = vmul.u32 %v1984, %v1975
        %v1992 = vadd.s32 %v1987, %v1989
        %vm1993 = vc.u32 %v1987, %v1989
        %v1994 = vadd.s32 %v1990, 1
        %v1995 = vsel %vm1993, %v1994, %v1990
        %v1996 = vadd.s32 %v1991, %v1995
        %v1997 = vadd.s32 %v1996, 536870912
        %v1998 = vshrl.u32 %v1997, 30
        %v1999 = vshll.u32 %v1998, 30
        %v2000 = vsub.s32 %v1996, %v1999
        %vm2001 = vcmp.lt.s32.totalorder %v2000, 0
        %v2002 = vsub.s32 0, %v2000
        %v2003 = vsel %vm2001, %v2002, %v2000
        %v2004 = vclz %v2003
        %v2005 = vsub.s32 %v2004, 2
        %vm2006 = vcmp.gt.s32.totalorder 0, %v2005
        %v2007 = vsel %vm2006, 0, %v2005
        %v2008 = vsub.s32 32, %v2007
        %v2009 = vshll.u32 %v2000, %v2007
        %v2010 = vshrl.u32 %v1992, %v2008
        %v2011 = vor.u32 %v2009, %v2010
        %v2012 = vsub.s32 4294967266, %v2007
        %v2013 = vadd.s32 %v2012, 127
        %v2014 = vshll.u32 %v2013, 23
        %v2015 = vor.u32 4788187, %v2014
        %v2016 = vand.u32 2147483647, %v2015
        %v2018 = vcvt.s32.f32 %v2011
        %v2019 = vmul.f32 %v2018, %v2016
        %v2020 = vxor.u32 %v2019, 2147483648
        %v2021 = vsel %vm1938, %v2020, %v2019
        %v2022 = vsub.s32 4, %v1998
        %v2023 = vsel %vm1938, %v2022, %v1998
        %v2024 = vsel %vm1937, %v1723, %v2021
        %v2025 = vsel %vm1937, 0, %v2023
        %v2026 = vcosq.f32.pop %v2024
        %v2027 = vsinq.f32.pop %v2024
        %vm2028 = vweird.f32 %v1723
        %v2029 = vand.u32 %v2025, 3
        %vm2030 = vcmp.lt.s32.totalorder %v2029, 2
        %vm2031 = vcmp.eq.s32.totalorder %v2029, 0
        %v2032 = vxor.u32 %v2027, 2147483648
        %v2033 = vsel %vm2031, %v2026, %v2032
        %vm2034 = vcmp.eq.s32.totalorder %v2029, 2
        %v2035 = vxor.u32 %v2026, 2147483648
        %v2036 = vsel %vm2034, %v2035, %v2027
        %v2037 = vsel %vm2030, %v2033, %v2036
        %v2038 = vsel %vm2028, nan, %v2037
        %v2039 = vand.u32 2147483647, %v1724
        %vm2040 = vcmp.le.f32.partialorder %v2039, 0.7853982
        %vm2041 = vcmp.lt.s32.totalorder %v1724, 0
        %v2042 = vand.u32 %v1724, 2139095040
        %v2043 = vshrl.u32 %v2042, 23
        %v2044 = vsub.s32 %v2043, 127
        %v2045 = vand.u32 2147483647, %v1724
        %v2046 = vand.u32 %v2045, 8388607
        %v2047 = vor.u32 %v2046, 8388608
        %v2048 = vsub.s32 0, %v2047
        %v2049 = vadd.s32 %v2044, 1
        %vm2050 = vcmp.gt.s32.totalorder %v2049, 0
        %v2051 = vsel %vm2050, %v2049, 0
        %v2052 = vshrl.u32 %v2051, 5
        %v2053 = vand.u32 %v2051, 31
        %v2054 = vsub.s32 32, %v2053
        %v2055 = vshrl.u32 683565275, %v2054
        %v2056 = vshll.u32 683565275, %v2053
        %v2057 = vshrl.u32 2475754826, %v2054
        %v2058 = vor.u32 %v2056, %v2057
        %v2059 = vshll.u32 2475754826, %v2053
        %v2060 = vshrl.u32 2131351028, %v2054
        %v2061 = vor.u32 %v2059, %v2060
        %v2062 = vshll.u32 2131351028, %v2053
        %v2063 = vshrl.u32 2102212464, %v2054
        %v2064 = vor.u32 %v2062, %v2063
        %v2065 = vshll.u32 2102212464, %v2053
        %v2066 = vshrl.u32 920167782, %v2054
        %v2067 = vor.u32 %v2065, %v2066
        %v2068 = vshll.u32 920167782, %v2053
        %v2069 = vshrl.u32 1326507024, %v2054
        %v2070 = vor.u32 %v2068, %v2069
        %vm2071 = vcmp.lt.s32.totalorder %v2052, 1
        %vm2072 = vcmp.lt.s32.totalorder %v2052, 2
        %vm2073 = vcmp.lt.s32.totalorder %v2052, 3
        %vm2074 = vcmp.lt.s32.totalorder %v2052, 4
        %v2075 = vsel %vm2071, %v2055, %v2058
        %v2076 = vsel %vm2074, %v2064, 2102212464
        %v2077 = vsel %vm2073, %v2061, %v2076
        %v2078 = vsel %vm2072, %v2075, %v2077
        %v2079 = vsel %vm2071, %v2058, %v2061
        %v2080 = vsel %vm2074, %v2067, 920167782
        %v2081 = vsel %vm2073, %v2064, %v2080
        %v2082 = vsel %vm2072, %v2079, %v2081
        %v2083 = vsel %vm2071, %v2061, %v2064
        %v2084 = vsel %vm2074, %v2070, 1326507024
        %v2085 = vsel %vm2073, %v2067, %v2084
        %v2086 = vsel %vm2072, %v2083, %v2085
        %v2087 = vshll.u32 %v2047, 8
        %v2088 = vmul.u32.u64.compose %v2087, %v2086
        %v2089 = vextract.low.u32 %v2088
        %v2090 = vextract.high.u32 %v2088
        %v2091 = vmul.u32.u64.compose %v2087, %v2082
        %v2092 = vextract.low.u32 %v2091
        %v2093 = vextract.high.u32 %v2091
        %v2094 = vmul.u32 %v2087, %v2078
        %v2095 = vadd.s32 %v2090, %v2092
        %vm2096 = vc.u32 %v2090, %v2092
        %v2097 = vadd.s32 %v2093, 1
        %v2098 = vsel %vm2096, %v2097, %v2093
        %v2099 = vadd.s32 %v2094, %v2098
        %v2100 = vadd.s32 %v2099, 536870912
        %v2101 = vshrl.u32 %v2100, 30
        %v2102 = vshll.u32 %v2101, 30
        %v2103 = vsub.s32 %v2099, %v2102
        %vm2104 = vcmp.lt.s32.totalorder %v2103, 0
        %v2105 = vsub.s32 0, %v2103
        %v2106 = vsel %vm2104, %v2105, %v2103
        %v2107 = vclz %v2106
        %v2108 = vsub.s32 %v2107, 2
        %vm2109 = vcmp.gt.s32.totalorder 0, %v2108
        %v2110 = vsel %vm2109, 0, %v2108
        %v2111 = vsub.s32 32, %v2110
        %v2112 = vshll.u32 %v2103, %v2110
        %v2113 = vshrl.u32 %v2095, %v2111
        %v2114 = vor.u32 %v2112, %v2113
        %v2115 = vsub.s32 4294967266, %v2110
        %v2116 = vadd.s32 %v2115, 127
        %v2117 = vshll.u32 %v2116, 23
        %v2118 = vor.u32 4788187, %v2117
        %v2119 = vand.u32 2147483647, %v2118
        %v2121 = vcvt.s32.f32 %v2114
        %v2122 = vmul.f32 %v2121, %v2119
        %v2123 = vxor.u32 %v2122, 2147483648
        %v2124 = vsel %vm2041, %v2123, %v2122
        %v2125 = vsub.s32 4, %v2101
        %v2126 = vsel %vm2041, %v2125, %v2101
        %v2127 = vsel %vm2040, %v1724, %v2124
        %v2128 = vsel %vm2040, 0, %v2126
        %v2129 = vcosq.f32.pop %v2127
        %v2130 = vsinq.f32.pop %v2127
        %vm2131 = vweird.f32 %v1724
        %v2132 = vand.u32 %v2128, 3
        %vm2133 = vcmp.lt.s32.totalorder %v2132, 2
        %vm2134 = vcmp.eq.s32.totalorder %v2132, 0
        %v2135 = vxor.u32 %v2130, 2147483648
        %v2136 = vsel %vm2134, %v2129, %v2135
        %vm2137 = vcmp.eq.s32.totalorder %v2132, 2
        %v2138 = vxor.u32 %v2129, 2147483648
        %v2139 = vsel %vm2137, %v2138, %v2130
        %v2140 = vsel %vm2133, %v2136, %v2139
        %v2141 = vsel %vm2131, nan, %v2140
        %v2144 = vrot.slane %v2038, 4
        %v2145 = vrot.slane %v2141, 4
        %2148 = vst [vmem:[%s1933] sm:$0xf0] %v2144
        %2149 = vst [vmem:[%s1933 + $0x8] sm:$0xf0] %v2145
        %s2150 = sand.u32 %s88, 1
        %s2151 = scalar_lea.sflag [#allocation5], %s2150
        %s2152 = sand.u32 %s88, 1
        %s2153 = smul.addr %s2152, 64
        %s2154 = scalar_lea.vmem [#allocation6], %s2153
        // Predicated region
        $region45: #{tpu_custom_call.1} parent=27 // pred_check
          %p2155 = pneg %p98
        $region46: #{tpu_custom_call.1} parent=27 // pred_check_branch
          %2157 = sbr.rel (%p2155) target = $region48
        $region47: #{tpu_custom_call.1} parent=27 // pred_region
          %s2159 = ssub.s32 1024, 1024
          %2160 = vsyncadd %s2151, %s2159
          %s2161 = smul.addr %s24, 2
          %s2162 = smul.addr %s23, 24
          %s2163 = sadd.s32 %s2161, %s2162
          %s2164 = smul.addr %s2163, 128
          %s2165 = scalar_lea.hbm %s2, %s2164
          %s2166 = sshll.u32 %s2154, 4
          %s2167 = int_to_ptr.vmem [resolvable:$true] %s2166
          %2172 = dma.vmem_to_hbm [thread:$0]  %s2167, 1024, %s2165, %s2151, 256, 768, 16
        $region48: #{tpu_custom_call.1} parent=27 // pred_fallthru
          _
      $region28: #{tpu_custom_call.1} parent=5 // pred_fallthru
        _
      %p2173 = scmp.le.s32.totalorder 2, %s14
      // Predicated region
      $region49: #{tpu_custom_call.1} parent=5 // pred_check
        %p2174 = pneg %p2173
      $region50: #{tpu_custom_call.1} parent=5 // pred_check_branch
        %2176 = sbr.rel (%p2174) target = $region52
      $region51: #{tpu_custom_call.1} parent=5 // pred_region
        %s2177 = ssub.s32 %s14, 2
        // Predicated region
        $region53: #{tpu_custom_call.1} parent=51 // pred_check
          %p2178 = pneg %p104
        $region54: #{tpu_custom_call.1} parent=51 // pred_check_branch
          %2180 = sbr.rel (%p2178) target = $region56
        $region55: #{tpu_custom_call.1} parent=51 // pred_region
          %s2181 = sand.u32 %s89, 1
          %s2182 = scalar_lea.sflag [#allocation5], %s2181
          %s2183 = sand.u32 %s89, 1
          %s2184 = smul.addr %s2183, 64
          %s2185 = scalar_lea.vmem [#allocation6], %s2184
          %2186 = dma.done %s2182, 1024
        $region56: #{tpu_custom_call.1} parent=51 // pred_fallthru
          _
      $region52: #{tpu_custom_call.1} parent=5 // pred_fallthru
        _
    $region6: #{tpu_custom_call.1} parent=1 // loop_footer
      %s18 = sadd.s32 1, %s14
    $region7: #{tpu_custom_call.1} parent=1 // loop_footer_branch
      %13 = sbr.rel target = $region3
    $region8: #{tpu_custom_call.1} parent=1 // loop_exit
      _
    %2187 = vsyncpa [#allocation4], 1
    %s2188 = scalar_lea.sflag [#allocation4], 1
    %2189 = vsyncpa %s2188, 1
    %2190 = vsyncpa [#allocation5], 1
    %s2191 = scalar_lea.sflag [#allocation5], 1
    %2192 = vsyncpa %s2191, 1

</llo_original>
